<compile_context>
chip_gen: v5e
topology: v5e:2x2
jax: 0.10.0
libtpu: 0.0.40
codegen_flags: <defaults>
</compile_context>

<pallas_src>
import functools
import math

import jax
import jax.numpy as jnp
from jax.experimental import pallas as pl
from jax.experimental.pallas import tpu as pltpu


def _ssd_head_kernel(x_ref, w_ref, b_ref, out_ref, *, row_tile, out_w, in_c, out_c):
    """Fused loc|conf 3x3 conv (padding=1) for one (batch, row-tile) grid point.

    x_ref:   (H+2, W+2, C)        padded NHWC features, bf16, resident per batch
    w_ref:   (9, C, CT_pad)       fused HWIO weights, bf16, tap-major (ky*3+kx)
    b_ref:   (1, CT_pad)          fused bias, f32
    out_ref: (row_tile*W, CT_pad) bf16
    """
    row0 = pl.multiple_of(pl.program_id(1) * row_tile, row_tile)
    acc = jnp.zeros((row_tile * out_w, out_c), jnp.float32)
    # TODO(synk): for very small C the 9 K=C dots underfill the MXU contraction
    # depth; a single K=9*C dot would need an unaligned lane-concat of packed
    # bf16 taps (relayout-heavy / fragile to lower), so per-tap bf16 dots fed
    # straight from the resident ref are used instead.
    for k in range(9):
        ky, kx = divmod(k, 3)
        tap = x_ref[pl.ds(row0 + ky, row_tile), pl.ds(kx, out_w), :]  # (TH, W, C) bf16
        acc = acc + jnp.dot(tap.reshape(row_tile * out_w, in_c),
                            w_ref[k],
                            preferred_element_type=jnp.float32)
    out_ref[...] = (acc + b_ref[...]).astype(out_ref.dtype)


def _pick_row_tile(h, w, max_out_rows=2048):
    """Pick TH dividing H with TH*W sublane-aligned (%8==0) and <= max_out_rows.

    Prefers (in order): >=2 row tiles (output-DMA pipelining), an even number of
    row tiles (v7x 2-TensorCore split of the m axis), then the largest tile.
    Falls back to the full H (block dims equal to full dims are always legal).
    """
    cands = [th for th in range(1, h + 1)
             if h % th == 0 and (th * w) % 8 == 0 and th * w <= max_out_rows]
    if not cands:
        return h
    return max(cands, key=lambda th: (h // th >= 2, (h // th) % 2 == 0, th * w))


def ssd_head_convs(features_nchw, w_loc, b_loc, w_conf, b_conf,
                   *, compute_dtype=jnp.bfloat16, out_dtype=jnp.bfloat16):
    """Runs the fused loc/conf 3x3 convs (padding=1) of SSDHead via Pallas.

    features_nchw: (N, C, H, W) float32 (PyTorch layout)
    w_loc, w_conf: (3, 3, C, Cout) float32 (HWIO)
    b_loc, b_conf: (Cout,) float32
    Returns loc: (N, H, W, Cl), conf: (N, H, W, Cc)  (== PyTorch permute(0,2,3,1))
    """
    N, C, H, W = features_nchw.shape
    Cl = w_loc.shape[-1]
    Cc = w_conf.shape[-1]
    CT = Cl + Cc
    CT_pad = ((CT + 127) // 128) * 128           # lane-dense output channel dim
    Hp, Wp = H + 2, W + 2

    # Glue: NCHW -> NHWC + bf16 cast + halo pad in one chain (fused by XLA).
    # TODO(synk): if the upstream producer can emit NHWC bf16 directly, pass it
    # straight in and drop this extra HBM round trip of the feature map.
    x = jnp.transpose(features_nchw, (0, 2, 3, 1)).astype(compute_dtype)
    x_pad = jnp.pad(x, ((0, 0), (1, 1), (1, 1), (0, 0)))

    # Fused loc|conf parameters: tap-major (ky*3+kx, C, CT_pad) bf16 weights
    # (both MXU operands bf16), (1, CT_pad) f32 bias for the f32 epilogue.
    w_fused = jnp.concatenate([w_loc, w_conf], axis=-1)              # (3,3,C,CT)
    w_fused = jnp.pad(w_fused, ((0, 0), (0, 0), (0, 0), (0, CT_pad - CT)))
    w_fused = w_fused.reshape(9, C, CT_pad).astype(compute_dtype)
    b_fused = jnp.concatenate([b_loc, b_conf], axis=-1)
    b_fused = jnp.pad(b_fused, (0, CT_pad - CT)).reshape(1, CT_pad).astype(jnp.float32)

    TH = _pick_row_tile(H, W)
    n_row_tiles = H // TH

    # Explicit VMEM budget (double-buffered input/weights/output + f32 acc),
    # with generous layout-padding factors; keeps tile choices safe on v7x's
    # 64 MiB/TC VMEM (default scoped limit 32 MiB) without over-claiming.
    def _ceil(a, b):
        return -(-a // b) * b
    in_tile = Hp * _ceil(Wp, 16) * _ceil(C, 128) * 2
    w_bytes = 9 * _ceil(C, 16) * CT_pad * 2
    out_tile = _ceil(TH * W, 16) * CT_pad * 2
    acc_bytes = TH * W * CT_pad * 4
    vmem_est = 2 * in_tile + 2 * w_bytes + 2 * out_tile + acc_bytes + (1 << 20)
    vmem_limit = int(min(max(4 * vmem_est, 16 << 20), 48 << 20))

    kernel = functools.partial(_ssd_head_kernel,
                               row_tile=TH, out_w=W, in_c=C, out_c=CT_pad)

    flops = 2 * N * H * W * 9 * C * CT_pad
    bytes_accessed = (x_pad.size * 2 + w_fused.size * 2 + b_fused.size * 4
                      + N * H * W * CT_pad * 2)

    grid_spec = pltpu.PrefetchScalarGridSpec(
        num_scalar_prefetch=0,
        grid=(N, n_row_tiles),
        in_specs=[
            # Full padded spatial tile per batch element; its index depends only
            # on n, so it stays resident across the row-tile axis (1x HBM read
            # per core).
            pl.BlockSpec((pl.Squeezed(), Hp, Wp, C), lambda n, m: (n, 0, 0, 0)),
            pl.BlockSpec((9, C, CT_pad), lambda n, m: (0, 0, 0)),
            pl.BlockSpec((1, CT_pad), lambda n, m: (0, 0)),
        ],
        out_specs=pl.BlockSpec((pl.Squeezed(), TH * W, CT_pad),
                               lambda n, m: (n, m, 0)),
    )

    out = pl.pallas_call(
        kernel,
        out_shape=jax.ShapeDtypeStruct((N, H * W, CT_pad), out_dtype),
        grid_spec=grid_spec,
        compiler_params=pltpu.CompilerParams(
            dimension_semantics=("parallel", "parallel"),
            vmem_limit_bytes=vmem_limit),
        cost_estimate=pl.CostEstimate(flops=flops, transcendentals=0,
                                      bytes_accessed=bytes_accessed),
    )(x_pad, w_fused, b_fused)

    out = out.reshape(N, H, W, CT_pad)
    return out[..., :Cl], out[..., Cl:CT]


def prior_box(feat_h, feat_w, img_h, img_w, min_size, max_size, aspect_ratios,
              flip, clip, variance, step, offset=0.5):
    """Caffe/SSD-style PriorBox: returns (1, 2, feat_h*feat_w*P*4)."""
    # TODO(synk): PriorBox is static scalar box arithmetic (no tensor hot path);
    # computed in plain JAX rather than inside the Pallas kernel.
    widths = [float(min_size), math.sqrt(min_size * max_size)]
    heights = [float(min_size), math.sqrt(min_size * max_size)]
    for ar in aspect_ratios:
        widths.append(min_size * math.sqrt(ar))
        heights.append(min_size / math.sqrt(ar))
        if flip:
            widths.append(min_size / math.sqrt(ar))
            heights.append(min_size * math.sqrt(ar))
    P = len(widths)
    wds = jnp.asarray(widths, jnp.float32)
    hts = jnp.asarray(heights, jnp.float32)

    cx = (jnp.arange(feat_w, dtype=jnp.float32) + offset) * step
    cy = (jnp.arange(feat_h, dtype=jnp.float32) + offset) * step
    cx = jnp.broadcast_to(cx[None, :, None], (feat_h, feat_w, P))
    cy = jnp.broadcast_to(cy[:, None, None], (feat_h, feat_w, P))
    w = jnp.broadcast_to(wds[None, None, :], (feat_h, feat_w, P))
    h = jnp.broadcast_to(hts[None, None, :], (feat_h, feat_w, P))

    xmin = (cx - 0.5 * w) / img_w
    ymin = (cy - 0.5 * h) / img_h
    xmax = (cx + 0.5 * w) / img_w
    ymax = (cy + 0.5 * h) / img_h
    boxes = jnp.stack([xmin, ymin, xmax, ymax], axis=-1).reshape(-1)
    if clip:
        boxes = jnp.clip(boxes, 0.0, 1.0)
    var = jnp.tile(jnp.asarray(variance, jnp.float32), feat_h * feat_w * P)
    return jnp.stack([boxes, var], axis=0)[None]   # (1, 2, fh*fw*P*4)


def _ref_conv_nhwc(x_nchw, w_hwio, b):
    """Reference 3x3/pad=1 conv via lax.conv (f32, HIGHEST precision), NHWC out."""
    out = jax.lax.conv_general_dilated(
        x_nchw, jnp.transpose(w_hwio, (3, 2, 0, 1)),   # HWIO -> OIHW
        window_strides=(1, 1), padding="SAME",
        dimension_numbers=("NCHW", "OIHW", "NCHW"),
        precision=jax.lax.Precision.HIGHEST)
    return jnp.transpose(out, (0, 2, 3, 1)) + b.reshape(1, 1, 1, -1)


if __name__ == "__main__":
    # SSDHead config (small, consistent with the module's __init__)
    N, C, H, W = 2, 4, 16, 16
    num_classes = 4
    aspect_ratios = (2.0,)
    flip, clip = True, True
    min_size, max_size = 16.0, 32.0
    steps = 8
    variance = (0.1, 0.1, 0.2, 0.2)
    num_priors = 2 + 2 * len(aspect_ratios)       # as in the module
    Cl = num_priors * 4
    Cc = num_priors * num_classes
    img_h = img_w = H * steps                     # 128

    key = jax.random.PRNGKey(0)
    k1, k2, k3, k4, k5, k6 = jax.random.split(key, 6)
    features = jax.random.normal(k1, (N, C, H, W), jnp.float32)          # NCHW, like PyTorch
    image_tensor = jax.random.normal(k2, (N, 3, img_h, img_w), jnp.float32)

    # Deterministic synthetic conv parameters (HWIO layout).
    w_loc = 0.1 * jax.random.normal(k3, (3, 3, C, Cl), jnp.float32)
    b_loc = 0.1 * jax.random.normal(k4, (Cl,), jnp.float32)
    w_conf = 0.1 * jax.random.normal(k5, (3, 3, C, Cc), jnp.float32)
    b_conf = 0.1 * jax.random.normal(k6, (Cc,), jnp.float32)

    loc, conf = ssd_head_convs(features, w_loc, b_loc, w_conf, b_conf)
    priors = prior_box(H, W, image_tensor.shape[2], image_tensor.shape[3],
                       min_size, max_size, aspect_ratios, flip, clip, variance, steps)
    jax.block_until_ready((loc, conf, priors))

    # Correctness: XLA f32 conv reference on the same bf16-quantized features
    # and weights; the kernel additionally rounds its outputs to bf16, hence
    # the slightly relaxed tolerance.
    feat_q = features.astype(jnp.bfloat16).astype(jnp.float32)
    wl_q = w_loc.astype(jnp.bfloat16).astype(jnp.float32)
    wc_q = w_conf.astype(jnp.bfloat16).astype(jnp.float32)
    loc_ref = _ref_conv_nhwc(feat_q, wl_q, b_loc)
    conf_ref = _ref_conv_nhwc(feat_q, wc_q, b_conf)
    assert loc.shape == (N, H, W, Cl) and conf.shape == (N, H, W, Cc)
    assert priors.shape == (1, 2, H * W * num_priors * 4)
    assert jnp.allclose(loc.astype(jnp.float32), loc_ref, atol=2e-2, rtol=2e-2)
    assert jnp.allclose(conf.astype(jnp.float32), conf_ref, atol=2e-2, rtol=2e-2)

    print("KERNEL_OK")
</pallas_src>

<mosaic_0001>
module attributes {stable_mosaic.version = 11 : i64} {
  func.func @_ssd_head_kernel(%arg0: i32, %arg1: i32, %arg2: memref<1x18x18x4xbf16, #tpu.memory_space<vmem>>, %arg3: memref<9x4x128xbf16, #tpu.memory_space<vmem>>, %arg4: memref<1x128xf32, #tpu.memory_space<vmem>>, %arg5: memref<1x128x128xbf16, #tpu.memory_space<vmem>>) attributes {dimension_semantics = [#tpu.dimension_semantics<parallel>, #tpu.dimension_semantics<parallel>], iteration_bounds = array<i64: 2, 2>, scalar_prefetch = 0 : i64, scratch_operands = 0 : i64, tpu.core_type = #tpu.core_type<tc>, window_params = [{transform_indices = @transform_0, window_bounds = array<i64: 1, 18, 18, 4>}, {pipeline_mode = #tpu.pipeline_mode<synchronous>, transform_indices = @transform_1, window_bounds = array<i64: 9, 4, 128>}, {pipeline_mode = #tpu.pipeline_mode<synchronous>, transform_indices = @transform_2, window_bounds = array<i64: 1, 128>}, {transform_indices = @transform_3, window_bounds = array<i64: 1, 128, 128>}]} {
    %c8_i32 = arith.constant 8 : i32
    %0 = arith.muli %arg1, %c8_i32 : i32
    %1 = tpu.assume_multiple %0, 8 : i32
    %cst = arith.constant 0.000000e+00 : f32
    %2 = vector.broadcast %cst : f32 to vector<128x128xf32>
    %c0_i32 = arith.constant 0 : i32
    %3 = arith.addi %1, %c0_i32 : i32
    %c0 = arith.constant 0 : index
    %4 = arith.index_cast %3 : i32 to index
    %c0_0 = arith.constant 0 : index
    %c0_1 = arith.constant 0 : index
    %5 = vector.load %arg2[%c0, %4, %c0_0, %c0_1] : memref<1x18x18x4xbf16, #tpu.memory_space<vmem>>, vector<1x8x16x4xbf16>
    %6 = vector.shape_cast %5 : vector<1x8x16x4xbf16> to vector<8x16x4xbf16>
    %7 = vector.shape_cast %6 : vector<8x16x4xbf16> to vector<128x4xbf16>
    %c0_2 = arith.constant 0 : index
    %c0_3 = arith.constant 0 : index
    %c0_4 = arith.constant 0 : index
    %8 = vector.load %arg3[%c0_2, %c0_3, %c0_4] : memref<9x4x128xbf16, #tpu.memory_space<vmem>>, vector<1x4x128xbf16>
    %9 = vector.shape_cast %8 : vector<1x4x128xbf16> to vector<4x128xbf16>
    %cst_5 = arith.constant dense<0.000000e+00> : vector<128x128xf32>
    %10 = tpu.matmul %7, %9, %cst_5 {dimension_numbers = #tpu.dot_dimension_numbers<[1], [0], [0], [1], [0, 0, 1, 1], [], []>} : vector<128x4xbf16>, vector<4x128xbf16>, vector<128x128xf32> -> vector<128x128xf32>
    %11 = arith.addf %2, %10 : vector<128x128xf32>
    %c0_i32_6 = arith.constant 0 : i32
    %12 = arith.addi %1, %c0_i32_6 : i32
    %c0_7 = arith.constant 0 : index
    %13 = arith.index_cast %12 : i32 to index
    %c1 = arith.constant 1 : index
    %c0_8 = arith.constant 0 : index
    %14 = vector.load %arg2[%c0_7, %13, %c1, %c0_8] : memref<1x18x18x4xbf16, #tpu.memory_space<vmem>>, vector<1x8x16x4xbf16>
    %15 = vector.shape_cast %14 : vector<1x8x16x4xbf16> to vector<8x16x4xbf16>
    %16 = vector.shape_cast %15 : vector<8x16x4xbf16> to vector<128x4xbf16>
    %c1_9 = arith.constant 1 : index
    %c0_10 = arith.constant 0 : index
    %c0_11 = arith.constant 0 : index
    %17 = vector.load %arg3[%c1_9, %c0_10, %c0_11] : memref<9x4x128xbf16, #tpu.memory_space<vmem>>, vector<1x4x128xbf16>
    %18 = vector.shape_cast %17 : vector<1x4x128xbf16> to vector<4x128xbf16>
    %cst_12 = arith.constant dense<0.000000e+00> : vector<128x128xf32>
    %19 = tpu.matmul %16, %18, %cst_12 {dimension_numbers = #tpu.dot_dimension_numbers<[1], [0], [0], [1], [0, 0, 1, 1], [], []>} : vector<128x4xbf16>, vector<4x128xbf16>, vector<128x128xf32> -> vector<128x128xf32>
    %20 = arith.addf %11, %19 : vector<128x128xf32>
    %c0_i32_13 = arith.constant 0 : i32
    %21 = arith.addi %1, %c0_i32_13 : i32
    %c0_14 = arith.constant 0 : index
    %22 = arith.index_cast %21 : i32 to index
    %c2 = arith.constant 2 : index
    %c0_15 = arith.constant 0 : index
    %23 = vector.load %arg2[%c0_14, %22, %c2, %c0_15] : memref<1x18x18x4xbf16, #tpu.memory_space<vmem>>, vector<1x8x16x4xbf16>
    %24 = vector.shape_cast %23 : vector<1x8x16x4xbf16> to vector<8x16x4xbf16>
    %25 = vector.shape_cast %24 : vector<8x16x4xbf16> to vector<128x4xbf16>
    %c2_16 = arith.constant 2 : index
    %c0_17 = arith.constant 0 : index
    %c0_18 = arith.constant 0 : index
    %26 = vector.load %arg3[%c2_16, %c0_17, %c0_18] : memref<9x4x128xbf16, #tpu.memory_space<vmem>>, vector<1x4x128xbf16>
    %27 = vector.shape_cast %26 : vector<1x4x128xbf16> to vector<4x128xbf16>
    %cst_19 = arith.constant dense<0.000000e+00> : vector<128x128xf32>
    %28 = tpu.matmul %25, %27, %cst_19 {dimension_numbers = #tpu.dot_dimension_numbers<[1], [0], [0], [1], [0, 0, 1, 1], [], []>} : vector<128x4xbf16>, vector<4x128xbf16>, vector<128x128xf32> -> vector<128x128xf32>
    %29 = arith.addf %20, %28 : vector<128x128xf32>
    %c1_i32 = arith.constant 1 : i32
    %30 = arith.addi %1, %c1_i32 : i32
    %c0_20 = arith.constant 0 : index
    %31 = arith.index_cast %30 : i32 to index
    %c0_21 = arith.constant 0 : index
    %c0_22 = arith.constant 0 : index
    %32 = vector.load %arg2[%c0_20, %31, %c0_21, %c0_22] : memref<1x18x18x4xbf16, #tpu.memory_space<vmem>>, vector<1x8x16x4xbf16>
    %33 = vector.shape_cast %32 : vector<1x8x16x4xbf16> to vector<8x16x4xbf16>
    %34 = vector.shape_cast %33 : vector<8x16x4xbf16> to vector<128x4xbf16>
    %c3 = arith.constant 3 : index
    %c0_23 = arith.constant 0 : index
    %c0_24 = arith.constant 0 : index
    %35 = vector.load %arg3[%c3, %c0_23, %c0_24] : memref<9x4x128xbf16, #tpu.memory_space<vmem>>, vector<1x4x128xbf16>
    %36 = vector.shape_cast %35 : vector<1x4x128xbf16> to vector<4x128xbf16>
    %cst_25 = arith.constant dense<0.000000e+00> : vector<128x128xf32>
    %37 = tpu.matmul %34, %36, %cst_25 {dimension_numbers = #tpu.dot_dimension_numbers<[1], [0], [0], [1], [0, 0, 1, 1], [], []>} : vector<128x4xbf16>, vector<4x128xbf16>, vector<128x128xf32> -> vector<128x128xf32>
    %38 = arith.addf %29, %37 : vector<128x128xf32>
    %c1_i32_26 = arith.constant 1 : i32
    %39 = arith.addi %1, %c1_i32_26 : i32
    %c0_27 = arith.constant 0 : index
    %40 = arith.index_cast %39 : i32 to index
    %c1_28 = arith.constant 1 : index
    %c0_29 = arith.constant 0 : index
    %41 = vector.load %arg2[%c0_27, %40, %c1_28, %c0_29] : memref<1x18x18x4xbf16, #tpu.memory_space<vmem>>, vector<1x8x16x4xbf16>
    %42 = vector.shape_cast %41 : vector<1x8x16x4xbf16> to vector<8x16x4xbf16>
    %43 = vector.shape_cast %42 : vector<8x16x4xbf16> to vector<128x4xbf16>
    %c4 = arith.constant 4 : index
    %c0_30 = arith.constant 0 : index
    %c0_31 = arith.constant 0 : index
    %44 = vector.load %arg3[%c4, %c0_30, %c0_31] : memref<9x4x128xbf16, #tpu.memory_space<vmem>>, vector<1x4x128xbf16>
    %45 = vector.shape_cast %44 : vector<1x4x128xbf16> to vector<4x128xbf16>
    %cst_32 = arith.constant dense<0.000000e+00> : vector<128x128xf32>
    %46 = tpu.matmul %43, %45, %cst_32 {dimension_numbers = #tpu.dot_dimension_numbers<[1], [0], [0], [1], [0, 0, 1, 1], [], []>} : vector<128x4xbf16>, vector<4x128xbf16>, vector<128x128xf32> -> vector<128x128xf32>
    %47 = arith.addf %38, %46 : vector<128x128xf32>
    %c1_i32_33 = arith.constant 1 : i32
    %48 = arith.addi %1, %c1_i32_33 : i32
    %c0_34 = arith.constant 0 : index
    %49 = arith.index_cast %48 : i32 to index
    %c2_35 = arith.constant 2 : index
    %c0_36 = arith.constant 0 : index
    %50 = vector.load %arg2[%c0_34, %49, %c2_35, %c0_36] : memref<1x18x18x4xbf16, #tpu.memory_space<vmem>>, vector<1x8x16x4xbf16>
    %51 = vector.shape_cast %50 : vector<1x8x16x4xbf16> to vector<8x16x4xbf16>
    %52 = vector.shape_cast %51 : vector<8x16x4xbf16> to vector<128x4xbf16>
    %c5 = arith.constant 5 : index
    %c0_37 = arith.constant 0 : index
    %c0_38 = arith.constant 0 : index
    %53 = vector.load %arg3[%c5, %c0_37, %c0_38] : memref<9x4x128xbf16, #tpu.memory_space<vmem>>, vector<1x4x128xbf16>
    %54 = vector.shape_cast %53 : vector<1x4x128xbf16> to vector<4x128xbf16>
    %cst_39 = arith.constant dense<0.000000e+00> : vector<128x128xf32>
    %55 = tpu.matmul %52, %54, %cst_39 {dimension_numbers = #tpu.dot_dimension_numbers<[1], [0], [0], [1], [0, 0, 1, 1], [], []>} : vector<128x4xbf16>, vector<4x128xbf16>, vector<128x128xf32> -> vector<128x128xf32>
    %56 = arith.addf %47, %55 : vector<128x128xf32>
    %c2_i32 = arith.constant 2 : i32
    %57 = arith.addi %1, %c2_i32 : i32
    %c0_40 = arith.constant 0 : index
    %58 = arith.index_cast %57 : i32 to index
    %c0_41 = arith.constant 0 : index
    %c0_42 = arith.constant 0 : index
    %59 = vector.load %arg2[%c0_40, %58, %c0_41, %c0_42] : memref<1x18x18x4xbf16, #tpu.memory_space<vmem>>, vector<1x8x16x4xbf16>
    %60 = vector.shape_cast %59 : vector<1x8x16x4xbf16> to vector<8x16x4xbf16>
    %61 = vector.shape_cast %60 : vector<8x16x4xbf16> to vector<128x4xbf16>
    %c6 = arith.constant 6 : index
    %c0_43 = arith.constant 0 : index
    %c0_44 = arith.constant 0 : index
    %62 = vector.load %arg3[%c6, %c0_43, %c0_44] : memref<9x4x128xbf16, #tpu.memory_space<vmem>>, vector<1x4x128xbf16>
    %63 = vector.shape_cast %62 : vector<1x4x128xbf16> to vector<4x128xbf16>
    %cst_45 = arith.constant dense<0.000000e+00> : vector<128x128xf32>
    %64 = tpu.matmul %61, %63, %cst_45 {dimension_numbers = #tpu.dot_dimension_numbers<[1], [0], [0], [1], [0, 0, 1, 1], [], []>} : vector<128x4xbf16>, vector<4x128xbf16>, vector<128x128xf32> -> vector<128x128xf32>
    %65 = arith.addf %56, %64 : vector<128x128xf32>
    %c2_i32_46 = arith.constant 2 : i32
    %66 = arith.addi %1, %c2_i32_46 : i32
    %c0_47 = arith.constant 0 : index
    %67 = arith.index_cast %66 : i32 to index
    %c1_48 = arith.constant 1 : index
    %c0_49 = arith.constant 0 : index
    %68 = vector.load %arg2[%c0_47, %67, %c1_48, %c0_49] : memref<1x18x18x4xbf16, #tpu.memory_space<vmem>>, vector<1x8x16x4xbf16>
    %69 = vector.shape_cast %68 : vector<1x8x16x4xbf16> to vector<8x16x4xbf16>
    %70 = vector.shape_cast %69 : vector<8x16x4xbf16> to vector<128x4xbf16>
    %c7 = arith.constant 7 : index
    %c0_50 = arith.constant 0 : index
    %c0_51 = arith.constant 0 : index
    %71 = vector.load %arg3[%c7, %c0_50, %c0_51] : memref<9x4x128xbf16, #tpu.memory_space<vmem>>, vector<1x4x128xbf16>
    %72 = vector.shape_cast %71 : vector<1x4x128xbf16> to vector<4x128xbf16>
    %cst_52 = arith.constant dense<0.000000e+00> : vector<128x128xf32>
    %73 = tpu.matmul %70, %72, %cst_52 {dimension_numbers = #tpu.dot_dimension_numbers<[1], [0], [0], [1], [0, 0, 1, 1], [], []>} : vector<128x4xbf16>, vector<4x128xbf16>, vector<128x128xf32> -> vector<128x128xf32>
    %74 = arith.addf %65, %73 : vector<128x128xf32>
    %c2_i32_53 = arith.constant 2 : i32
    %75 = arith.addi %1, %c2_i32_53 : i32
    %c0_54 = arith.constant 0 : index
    %76 = arith.index_cast %75 : i32 to index
    %c2_55 = arith.constant 2 : index
    %c0_56 = arith.constant 0 : index
    %77 = vector.load %arg2[%c0_54, %76, %c2_55, %c0_56] : memref<1x18x18x4xbf16, #tpu.memory_space<vmem>>, vector<1x8x16x4xbf16>
    %78 = vector.shape_cast %77 : vector<1x8x16x4xbf16> to vector<8x16x4xbf16>
    %79 = vector.shape_cast %78 : vector<8x16x4xbf16> to vector<128x4xbf16>
    %c8 = arith.constant 8 : index
    %c0_57 = arith.constant 0 : index
    %c0_58 = arith.constant 0 : index
    %80 = vector.load %arg3[%c8, %c0_57, %c0_58] : memref<9x4x128xbf16, #tpu.memory_space<vmem>>, vector<1x4x128xbf16>
    %81 = vector.shape_cast %80 : vector<1x4x128xbf16> to vector<4x128xbf16>
    %cst_59 = arith.constant dense<0.000000e+00> : vector<128x128xf32>
    %82 = tpu.matmul %79, %81, %cst_59 {dimension_numbers = #tpu.dot_dimension_numbers<[1], [0], [0], [1], [0, 0, 1, 1], [], []>} : vector<128x4xbf16>, vector<4x128xbf16>, vector<128x128xf32> -> vector<128x128xf32>
    %83 = arith.addf %74, %82 : vector<128x128xf32>
    %c0_60 = arith.constant 0 : index
    %c0_61 = arith.constant 0 : index
    %84 = vector.load %arg4[%c0_60, %c0_61] : memref<1x128xf32, #tpu.memory_space<vmem>>, vector<1x128xf32>
    %85 = vector.broadcast %84 : vector<1x128xf32> to vector<128x128xf32>
    %86 = arith.addf %83, %85 : vector<128x128xf32>
    %87 = arith.truncf %86 : vector<128x128xf32> to vector<128x128xbf16>
    %c0_62 = arith.constant 0 : index
    %c0_63 = arith.constant 0 : index
    %c0_64 = arith.constant 0 : index
    %88 = vector.load %arg5[%c0_62, %c0_63, %c0_64] : memref<1x128x128xbf16, #tpu.memory_space<vmem>>, vector<1x128x128xbf16>
    %89 = vector.shape_cast %88 : vector<1x128x128xbf16> to vector<128x128xbf16>
    %90 = vector.shape_cast %87 : vector<128x128xbf16> to vector<1x128x128xbf16>
    tpu.vector_store %arg5[%c0_62, %c0_63, %c0_64], %90 {strides = array<i32>} : memref<1x128x128xbf16, #tpu.memory_space<vmem>>, vector<1x128x128xbf16>,
    return
  }
  func.func @transform_0(%arg0: i32, %arg1: i32) -> (i32, i32, i32, i32) {
    %c0_i32 = arith.constant 0 : i32
    %c0_i32_0 = arith.constant 0 : i32
    %c0_i32_1 = arith.constant 0 : i32
    %c0_i32_2 = arith.constant 0 : i32
    return %arg0, %c0_i32, %c0_i32_0, %c0_i32_1 : i32, i32, i32, i32
  }
  func.func @transform_1(%arg0: i32, %arg1: i32) -> (i32, i32, i32) {
    %c0_i32 = arith.constant 0 : i32
    %c0_i32_0 = arith.constant 0 : i32
    %c0_i32_1 = arith.constant 0 : i32
    %c0_i32_2 = arith.constant 0 : i32
    return %c0_i32, %c0_i32_0, %c0_i32_1 : i32, i32, i32
  }
  func.func @transform_2(%arg0: i32, %arg1: i32) -> (i32, i32) {
    %c0_i32 = arith.constant 0 : i32
    %c0_i32_0 = arith.constant 0 : i32
    %c0_i32_1 = arith.constant 0 : i32
    return %c0_i32, %c0_i32_0 : i32, i32
  }
  func.func @transform_3(%arg0: i32, %arg1: i32) -> (i32, i32, i32) {
    %c0_i32 = arith.constant 0 : i32
    %c0_i32_0 = arith.constant 0 : i32
    return %arg0, %arg1, %c0_i32 : i32, i32, i32
  }
}

</mosaic_0001>

<llo_original>
// kernel: tpu_custom_call.1
$region0: #{tpu_custom_call.1}
  #allocation0 [shape = 'u32[]', space=smem, size = 0x4, offset = 0x4, fixed_abs, tag = 'smem constant byte address 0x4 - core index']
  #allocation1 [shape = 'u32[72,128]{1,0:T(1,128)}', space=vmem, size = 0x9000, scoped, tag = 'internal scratch']
  %s0 = inlined_call_operand.vmem [shape: bf16[2,18,18,4], index: 0, kind: input, shape index: {}]
  %s1 = inlined_call_operand.vmem [shape: bf16[9,4,128], index: 1, kind: input, shape index: {}]
  %s2 = inlined_call_operand.vmem [shape: f32[1,128], index: 2, kind: input, shape index: {}]
  %s3 = inlined_call_operand.hbm [shape: bf16[2,256,128], index: 3, kind: output, shape index: {}]
  %s4 = sld [smem:[#allocation0]]
  $region45: #{tpu_custom_call.1} parent=0
    _
  %s6 = ssub.s32 1, %s4
  %s7 = scalar_select 0, %s6, %s4
  $region1: #{tpu_custom_call.1} parent=0
    #allocation2 [shape = 'u8[65536]{0}', space=vmem, size = 0x10000, scoped, tag = 'output window, operand 0']
    #allocation3 [shape = 's32[2]{0}', space=sflag, size = 0x8, scoped, tag = 'scoped memory for tpu_custom_call.1']
    %8 = vsyncpa [#allocation3], 0
    %s9 = scalar_lea.sflag [#allocation3], 1
    %10 = vsyncpa %s9, 0
    loop: start=0, step=1, limit=6
    $region2: #{tpu_custom_call.1} parent=1 // loop_pre_header
      _
    $region3: #{tpu_custom_call.1} parent=1 // loop_header
      %s12 = sphi 0, %s16
      %p13 = scmp.ge.s32.totalorder %s12, 6
      %s19 = sphi 0, %s31
      %s20 = sphi 0, %s27
      %s21 = sphi 0, %s19
      %s22 = sphi 0, %s20
      %s23 = sphi 0, %s21
      %s24 = sphi 0, %s22
      %s34 = sphi 0, %s36
      %s37 = sphi 0, %s34
      %s38 = sphi 0, %s37
      %s54 = sphi 0, %s38
      %s58 = sphi 0, %s58
      %s60 = sphi 0, %s58
      %s61 = sphi 0, %s60
      %s75 = sphi 0, %s61
      %s79 = sphi 0, %s79
      %s81 = sphi 0, %s79
      %s82 = sphi 0, %s81
      %s96 = sphi 0, %s82
      %s104 = sphi 0, %s106
      %s107 = sphi 0, %s104
      %s108 = sphi 0, %s107
      %s124 = sphi 0, %s108
    $region4: #{tpu_custom_call.1} parent=1 // loop_header_branch
      %15 = sbr.rel (%p13) target = $region8
    $region5: #{tpu_custom_call.1} parent=1 // loop_body
      %s17 = ssub.s32 %s12, 1
      %s18 = ssub.s32 %s12, 2
      %s25 = sadd.s32 1, %s20
      %p26 = scmp.ge.s32.totalorder %s25, 2
      %s27 = scalar_select %p26, 0, %s25
      %s28 = sadd.s32 1, %s19
      %s29 = scalar_select %p26, %s28, %s19
      %p30 = scmp.ge.s32.totalorder %s29, 2
      %s31 = scalar_select %p30, 0, %s29
      %s32 = ssub.s32 %s19, %s31
      %p33 = scmp.eq.s32.totalorder %s32, 0
      %s35 = sadd.s32 %s34, 1
      %s36 = scalar_select %p33, %s34, %s35
      %p39 = pneg %p33
      %p40 = scmp.eq.s32.totalorder %s12, 3
      %p41 = por %p39, %p40
      %p42 = scmp.ne.s32.totalorder %s34, %s37
      %p43 = scmp.eq.s32.totalorder %s12, 0
      %p44 = por %p42, %p43
      %p45 = scmp.ne.s32.totalorder %s34, %s37
      %p46 = scmp.eq.s32.totalorder %s17, 3
      %p47 = por %p45, %p46
      %p48 = scmp.ne.s32.totalorder %s37, %s38
      %p49 = scmp.eq.s32.totalorder %s17, 0
      %p50 = por %p48, %p49
      %p51 = scmp.ne.s32.totalorder %s37, %s38
      %p52 = scmp.eq.s32.totalorder %s18, 3
      %p53 = por %p51, %p52
      %p55 = scmp.ne.s32.totalorder %s38, %s54
      %p56 = scmp.eq.s32.totalorder %s18, 0
      %p57 = por %p55, %p56
      %s59 = sadd.s32 %s58, 1
      %p62 = scmp.eq.s32.totalorder %s12, 3
      %p63 = scmp.ne.s32.totalorder %s58, %s60
      %p64 = scmp.eq.s32.totalorder %s12, 0
      %p65 = por %p63, %p64
      %p66 = scmp.ne.s32.totalorder %s58, %s60
      %p67 = scmp.eq.s32.totalorder %s17, 3
      %p68 = por %p66, %p67
      %p69 = scmp.ne.s32.totalorder %s60, %s61
      %p70 = scmp.eq.s32.totalorder %s17, 0
      %p71 = por %p69, %p70
      %p72 = scmp.ne.s32.totalorder %s60, %s61
      %p73 = scmp.eq.s32.totalorder %s18, 3
      %p74 = por %p72, %p73
      %p76 = scmp.ne.s32.totalorder %s61, %s75
      %p77 = scmp.eq.s32.totalorder %s18, 0
      %p78 = por %p76, %p77
      %s80 = sadd.s32 %s79, 1
      %p83 = scmp.eq.s32.totalorder %s12, 3
      %p84 = scmp.ne.s32.totalorder %s79, %s81
      %p85 = scmp.eq.s32.totalorder %s12, 0
      %p86 = por %p84, %p85
      %p87 = scmp.ne.s32.totalorder %s79, %s81
      %p88 = scmp.eq.s32.totalorder %s17, 3
      %p89 = por %p87, %p88
      %p90 = scmp.ne.s32.totalorder %s81, %s82
      %p91 = scmp.eq.s32.totalorder %s17, 0
      %p92 = por %p90, %p91
      %p93 = scmp.ne.s32.totalorder %s81, %s82
      %p94 = scmp.eq.s32.totalorder %s18, 3
      %p95 = por %p93, %p94
      %p97 = scmp.ne.s32.totalorder %s82, %s96
      %p98 = scmp.eq.s32.totalorder %s18, 0
      %p99 = por %p97, %p98
      %s100 = ssub.s32 %s19, %s31
      %s101 = ssub.s32 %s20, %s27
      %s102 = sor.u32 %s100, %s101
      %p103 = scmp.eq.s32.totalorder %s102, 0
      %s105 = sadd.s32 %s104, 1
      %s106 = scalar_select %p103, %s104, %s105
      %p109 = pneg %p103
      %p110 = scmp.eq.s32.totalorder %s12, 3
      %p111 = por %p109, %p110
      %p112 = scmp.ne.s32.totalorder %s104, %s107
      %p113 = scmp.eq.s32.totalorder %s12, 0
      %p114 = por %p112, %p113
      %p115 = scmp.ne.s32.totalorder %s104, %s107
      %p116 = scmp.eq.s32.totalorder %s17, 3
      %p117 = por %p115, %p116
      %p118 = scmp.ne.s32.totalorder %s107, %s108
      %p119 = scmp.eq.s32.totalorder %s17, 0
      %p120 = por %p118, %p119
      %p121 = scmp.ne.s32.totalorder %s107, %s108
      %p122 = scmp.eq.s32.totalorder %s18, 3
      %p123 = por %p121, %p122
      %p125 = scmp.ne.s32.totalorder %s108, %s124
      %p126 = scmp.eq.s32.totalorder %s18, 0
      %p127 = por %p125, %p126
      %p128 = scmp.le.s32.totalorder 1, %s12
      %p129 = scmp.lt.s32.totalorder %s12, 5
      %p130 = pnand %p128, %p129
      %p131 = pneg %p130
      // Predicated region
      $region9: #{tpu_custom_call.1} parent=5 // pred_check
        _
      $region10: #{tpu_custom_call.1} parent=5 // pred_check_branch
        %133 = sbr.rel (%p130) target = $region12
      $region11: #{tpu_custom_call.1} parent=5 // pred_region
        %s134 = ssub.s32 %s12, 1
        // Predicated region
        $region13: #{tpu_custom_call.1} parent=11 // pred_check
          %p135 = pneg %p71
        $region14: #{tpu_custom_call.1} parent=11 // pred_check_branch
          %137 = sbr.rel (%p135) target = $region16
        $region15: #{tpu_custom_call.1} parent=11 // pred_region
          _
        $region16: #{tpu_custom_call.1} parent=11 // pred_fallthru
          _
        // Predicated region
        $region17: #{tpu_custom_call.1} parent=11 // pred_check
          %p138 = pneg %p92
        $region18: #{tpu_custom_call.1} parent=11 // pred_check_branch
          %140 = sbr.rel (%p138) target = $region20
        $region19: #{tpu_custom_call.1} parent=11 // pred_region
          _
        $region20: #{tpu_custom_call.1} parent=11 // pred_fallthru
          _
      $region12: #{tpu_custom_call.1} parent=5 // pred_fallthru
        _
      %p141 = scmp.lt.s32.totalorder %s12, 4
      // Predicated region
      $region21: #{tpu_custom_call.1} parent=5 // pred_check
        %p142 = pneg %p141
      $region22: #{tpu_custom_call.1} parent=5 // pred_check_branch
        %144 = sbr.rel (%p142) target = $region24
      $region23: #{tpu_custom_call.1} parent=5 // pred_region
        // Predicated region
        $region25: #{tpu_custom_call.1} parent=23 // pred_check
          %p145 = pneg %p44
        $region26: #{tpu_custom_call.1} parent=23 // pred_check_branch
          %147 = sbr.rel (%p145) target = $region28
        $region27: #{tpu_custom_call.1} parent=23 // pred_region
          %p148 = scmp.lt.s32.totalorder %s19, 1
          %s149 = scalar_select %p148, %s19, 1
          %s150 = smul.addr %s149, 54
          %s151 = smul.addr %s150, 4
          %s152 = scalar_lea.vmem %s0, %s151
        $region28: #{tpu_custom_call.1} parent=23 // pred_fallthru
          _
      $region24: #{tpu_custom_call.1} parent=5 // pred_fallthru
        _
      %p153 = scmp.le.s32.totalorder 1, %s12
      %p154 = scmp.lt.s32.totalorder %s12, 5
      %p155 = pnand %p153, %p154
      %p156 = pneg %p155
      // Predicated region
      $region29: #{tpu_custom_call.1} parent=5 // pred_check
        _
      $region30: #{tpu_custom_call.1} parent=5 // pred_check_branch
        %158 = sbr.rel (%p155) target = $region32
      $region31: #{tpu_custom_call.1} parent=5 // pred_region
        %s159 = ssub.s32 %s12, 1
        %p160 = scmp.lt.s32.totalorder %s21, 1
        %s161 = scalar_select %p160, %s21, 1
        %s162 = smul.addr %s161, 54
        %s163 = smul.addr %s162, 4
        %s164 = scalar_lea.vmem %s0, %s163
        %p165 = pneg %p50
        %p166 = pneg %p47
        %p167 = pneg %p71
        %p168 = pneg %p68
        %p169 = pneg %p92
        %p170 = pneg %p89
        %p171 = pneg %p120
        %p172 = pneg %p117
        %s173 = sand.u32 %s107, 1
        %s174 = scalar_lea.sflag [#allocation3], %s173
        %s175 = sand.u32 %s107, 1
        %s176 = smul.addr %s175, 64
        %s177 = scalar_lea.vmem [#allocation2], %s176
        %p178 = scmp.lt.s32.totalorder %s21, 1
        %s179 = scalar_select %p178, %s21, 1
        %s180 = smul.addr %s179, 54
        %s181 = smul.addr %s180, 4
        %s182 = scalar_lea.vmem %s0, %s181
        %s183 = smul.u32 16, %s22
        %s185 = smul.u32 %s22, 8
        %s186 = smul.u32 %s185, 3
        %s187 = smul.addr %s186, 4
        %s188 = scalar_lea.vmem %s182, %s187
        %v189 = vld [vmem:[%s188] sm:$0xf]
        %v190 = vld [vmem:[%s188 + $0x4] sm:$0xf]
        %v191 = vld [vmem:[%s188 + $0xc] sm:$0xf]
        %v192 = vld [vmem:[%s188 + $0x10] sm:$0xf]
        %v193 = vld [vmem:[%s188 + $0x18] sm:$0xf]
        %v194 = vld [vmem:[%s188 + $0x1c] sm:$0xf]
        %v195 = vld [vmem:[%s188 + $0x24] sm:$0xf]
        %v196 = vld [vmem:[%s188 + $0x28] sm:$0xf]
        %v197 = vld [vmem:[%s188 + $0x30] sm:$0xf]
        %v198 = vld [vmem:[%s188 + $0x34] sm:$0xf]
        %v199 = vld [vmem:[%s188 + $0x3c] sm:$0xf]
        %v200 = vld [vmem:[%s188 + $0x40] sm:$0xf]
        %v201 = vld [vmem:[%s188 + $0x48] sm:$0xf]
        %v202 = vld [vmem:[%s188 + $0x4c] sm:$0xf]
        %v203 = vld [vmem:[%s188 + $0x54] sm:$0xf]
        %v204 = vld [vmem:[%s188 + $0x58] sm:$0xf]
        %v205 = vld [vmem:[%s1] sm:$0x3]
        %v206 = vld [vmem:[%s188 + $0x8] sm:$0x1]
        %v207 = vld [vmem:[%s188 + $0x14] sm:$0x1]
        %v208 = vld [vmem:[%s188 + $0x20] sm:$0x1]
        %v209 = vld [vmem:[%s188 + $0x2c] sm:$0x1]
        %v210 = vld [vmem:[%s188 + $0x38] sm:$0x1]
        %v211 = vld [vmem:[%s188 + $0x44] sm:$0x1]
        %v212 = vld [vmem:[%s188 + $0x50] sm:$0x1]
        %v213 = vld [vmem:[%s188 + $0x5c] sm:$0x1]
        %vm214 = vsmask.f32 3328
        %vm215 = vsmask.f32 7440
        %vm216 = vmor %vm214, %vm215
        %v218 = vshrl.u32 %v189, 16
        %v220 = vrot.slane %v218, 4
        %v221 = vshll.u32 %v189, 16
        %v223 = vrot.slane %v221, 5
        %v224 = vor.u32 %v220, %v223
        %v225 = vrot.slane %v224, 4
        %v227 = vshll.u32 %v190, 16
        %v229 = vrot.slane %v227, 5
        %v230 = vsel %vm216, %v225, %v229
        %v231 = vshrl.u32 %v190, 16
        %v233 = vrot.slane %v231, 4
        %v234 = vor.u32 %v233, %v229
        %v235 = vrot.slane %v234, 4
        %v237 = vshll.u32 %v206, 16
        %v239 = vrot.slane %v237, 5
        %v240 = vsel %vm216, %v235, %v239
        %v242 = vshrl.u32 %v191, 16
        %v244 = vrot.slane %v242, 4
        %v245 = vshll.u32 %v191, 16
        %v247 = vrot.slane %v245, 5
        %v248 = vor.u32 %v244, %v247
        %v249 = vrot.slane %v248, 4
        %v251 = vshll.u32 %v192, 16
        %v253 = vrot.slane %v251, 5
        %v254 = vsel %vm216, %v249, %v253
        %v255 = vshrl.u32 %v192, 16
        %v257 = vrot.slane %v255, 4
        %v258 = vor.u32 %v257, %v253
        %v259 = vrot.slane %v258, 4
        %v261 = vshll.u32 %v207, 16
        %v263 = vrot.slane %v261, 5
        %v264 = vsel %vm216, %v259, %v263
        %v266 = vshrl.u32 %v193, 16
        %v268 = vrot.slane %v266, 4
        %v269 = vshll.u32 %v193, 16
        %v271 = vrot.slane %v269, 5
        %v272 = vor.u32 %v268, %v271
        %v273 = vrot.slane %v272, 4
        %v275 = vshll.u32 %v194, 16
        %v277 = vrot.slane %v275, 5
        %v278 = vsel %vm216, %v273, %v277
        %v279 = vshrl.u32 %v194, 16
        %v281 = vrot.slane %v279, 4
        %v282 = vor.u32 %v281, %v277
        %v283 = vrot.slane %v282, 4
        %v285 = vshll.u32 %v208, 16
        %v287 = vrot.slane %v285, 5
        %v288 = vsel %vm216, %v283, %v287
        %v290 = vshrl.u32 %v195, 16
        %v292 = vrot.slane %v290, 4
        %v293 = vshll.u32 %v195, 16
        %v295 = vrot.slane %v293, 5
        %v296 = vor.u32 %v292, %v295
        %v297 = vrot.slane %v296, 4
        %v299 = vshll.u32 %v196, 16
        %v301 = vrot.slane %v299, 5
        %v302 = vsel %vm216, %v297, %v301
        %v303 = vshrl.u32 %v196, 16
        %v305 = vrot.slane %v303, 4
        %v306 = vor.u32 %v305, %v301
        %v307 = vrot.slane %v306, 4
        %v309 = vshll.u32 %v209, 16
        %v311 = vrot.slane %v309, 5
        %v312 = vsel %vm216, %v307, %v311
        %v314 = vshrl.u32 %v197, 16
        %v316 = vrot.slane %v314, 4
        %v317 = vshll.u32 %v197, 16
        %v319 = vrot.slane %v317, 5
        %v320 = vor.u32 %v316, %v319
        %v321 = vrot.slane %v320, 4
        %v323 = vshll.u32 %v198, 16
        %v325 = vrot.slane %v323, 5
        %v326 = vsel %vm216, %v321, %v325
        %v327 = vshrl.u32 %v198, 16
        %v329 = vrot.slane %v327, 4
        %v330 = vor.u32 %v329, %v325
        %v331 = vrot.slane %v330, 4
        %v333 = vshll.u32 %v210, 16
        %v335 = vrot.slane %v333, 5
        %v336 = vsel %vm216, %v331, %v335
        %v338 = vshrl.u32 %v199, 16
        %v340 = vrot.slane %v338, 4
        %v341 = vshll.u32 %v199, 16
        %v343 = vrot.slane %v341, 5
        %v344 = vor.u32 %v340, %v343
        %v345 = vrot.slane %v344, 4
        %v347 = vshll.u32 %v200, 16
        %v349 = vrot.slane %v347, 5
        %v350 = vsel %vm216, %v345, %v349
        %v351 = vshrl.u32 %v200, 16
        %v353 = vrot.slane %v351, 4
        %v354 = vor.u32 %v353, %v349
        %v355 = vrot.slane %v354, 4
        %v357 = vshll.u32 %v211, 16
        %v359 = vrot.slane %v357, 5
        %v360 = vsel %vm216, %v355, %v359
        %v362 = vshrl.u32 %v201, 16
        %v364 = vrot.slane %v362, 4
        %v365 = vshll.u32 %v201, 16
        %v367 = vrot.slane %v365, 5
        %v368 = vor.u32 %v364, %v367
        %v369 = vrot.slane %v368, 4
        %v371 = vshll.u32 %v202, 16
        %v373 = vrot.slane %v371, 5
        %v374 = vsel %vm216, %v369, %v373
        %v375 = vshrl.u32 %v202, 16
        %v377 = vrot.slane %v375, 4
        %v378 = vor.u32 %v377, %v373
        %v379 = vrot.slane %v378, 4
        %v381 = vshll.u32 %v212, 16
        %v383 = vrot.slane %v381, 5
        %v384 = vsel %vm216, %v379, %v383
        %v386 = vshrl.u32 %v203, 16
        %v388 = vrot.slane %v386, 4
        %v389 = vshll.u32 %v203, 16
        %v391 = vrot.slane %v389, 5
        %v392 = vor.u32 %v388, %v391
        %v393 = vrot.slane %v392, 4
        %v395 = vshll.u32 %v204, 16
        %v397 = vrot.slane %v395, 5
        %v398 = vsel %vm216, %v393, %v397
        %v399 = vshrl.u32 %v204, 16
        %v401 = vrot.slane %v399, 4
        %v402 = vor.u32 %v401, %v397
        %v403 = vrot.slane %v402, 4
        %v405 = vshll.u32 %v213, 16
        %v407 = vrot.slane %v405, 5
        %v408 = vsel %vm216, %v403, %v407
        %s409 = scalar_lea.vmem %s1, 2
        %v410 = vld [vmem:[%s409] sm:$0x3]
        %v411 = vunpack.c.l.b16 %v230
        %v412 = vunpack.c.l.b16 %v240
        %v413 = vunpack.c.l.b16 %v254
        %v414 = vunpack.c.l.b16 %v264
        %v415 = vunpack.c.l.b16 %v278
        %v416 = vunpack.c.l.b16 %v288
        %v417 = vunpack.c.l.b16 %v302
        %v418 = vunpack.c.l.b16 %v312
        %v419 = vunpack.c.l.b16 %v326
        %v420 = vunpack.c.l.b16 %v336
        %v421 = vunpack.c.l.b16 %v350
        %v422 = vunpack.c.l.b16 %v360
        %v423 = vunpack.c.l.b16 %v374
        %v424 = vunpack.c.l.b16 %v384
        %v425 = vunpack.c.l.b16 %v398
        %v426 = vunpack.c.l.b16 %v408
        %v427 = vpack.c.b16 %v412, %v411
        %v428 = vpack.c.b16 %v414, %v413
        %v429 = vpack.c.b16 %v416, %v415
        %v430 = vpack.c.b16 %v418, %v417
        %v431 = vpack.c.b16 %v420, %v419
        %v432 = vpack.c.b16 %v422, %v421
        %v433 = vpack.c.b16 %v424, %v423
        %v434 = vpack.c.b16 %v426, %v425
        %vm435 = vcmask 31744
        %v437 = vsel %vm435, %v427, 0
        %v440 = vsel %vm435, %v428, 0
        %v443 = vsel %vm435, %v429, 0
        %v446 = vsel %vm435, %v430, 0
        %v449 = vsel %vm435, %v431, 0
        %v452 = vsel %vm435, %v432, 0
        %v455 = vsel %vm435, %v433, 0
        %v458 = vsel %vm435, %v434, 0
        %vm460 = vcmask 1041408
        %v462 = vsel %vm460, %v410, 0
        %464 = vmatpush.bf16.msra.mxu0 0
        %465 = vmatpush.bf16.msra.mxu0 0
        %466 = vmatpush.bf16.msra.mxu0 0
        %467 = vmatpush.bf16.msra.mxu0 0
        %468 = vmatpush.bf16.msra.mxu0 0
        %469 = vmatpush.bf16.msra.mxu0 0
        %470 = vmatpush.bf16.msra.mxu0 0
        %471 = vmatpush.bf16.msra.mxu0 %v462
        %472 = vmatmul.bf16.gmra.mxu0 %v437
        %v473 = vpop.f32.mrf.mxu0
        %v474 = vadd.f32 0.0, %v473
        %v475 = vpop.f32.mrf.mxu0
        %v476 = vadd.f32 0.0, %v475
        %477 = vmatmul.bf16.gmra.mxu0 %v440
        %v478 = vpop.f32.mrf.mxu0
        %v479 = vadd.f32 0.0, %v478
        %v480 = vpop.f32.mrf.mxu0
        %v481 = vadd.f32 0.0, %v480
        %482 = vmatmul.bf16.gmra.mxu0 %v443
        %v483 = vpop.f32.mrf.mxu0
        %v484 = vadd.f32 0.0, %v483
        %v485 = vpop.f32.mrf.mxu0
        %v486 = vadd.f32 0.0, %v485
        %487 = vmatmul.bf16.gmra.mxu0 %v446
        %v488 = vpop.f32.mrf.mxu0
        %v489 = vadd.f32 0.0, %v488
        %v490 = vpop.f32.mrf.mxu0
        %v491 = vadd.f32 0.0, %v490
        %492 = vmatmul.bf16.gmra.mxu0 %v449
        %v493 = vpop.f32.mrf.mxu0
        %v494 = vadd.f32 0.0, %v493
        %v495 = vpop.f32.mrf.mxu0
        %v496 = vadd.f32 0.0, %v495
        %497 = vmatmul.bf16.gmra.mxu0 %v452
        %v498 = vpop.f32.mrf.mxu0
        %v499 = vadd.f32 0.0, %v498
        %v500 = vpop.f32.mrf.mxu0
        %v501 = vadd.f32 0.0, %v500
        %502 = vmatmul.bf16.gmra.mxu0 %v455
        %v503 = vpop.f32.mrf.mxu0
        %v504 = vadd.f32 0.0, %v503
        %v505 = vpop.f32.mrf.mxu0
        %v506 = vadd.f32 0.0, %v505
        %507 = vmatmul.bf16.gmra.mxu0 %v458
        %v508 = vpop.f32.mrf.mxu0
        %v509 = vadd.f32 0.0, %v508
        %v510 = vpop.f32.mrf.mxu0
        %v511 = vadd.f32 0.0, %v510
        %512 = vdwg.mxu0
        %v529 = vunpack.c.l.b16 %v189
        %v530 = vunpack.c.l.b16 %v190
        %v531 = vunpack.c.l.b16 %v191
        %v532 = vunpack.c.l.b16 %v192
        %v533 = vunpack.c.l.b16 %v193
        %v534 = vunpack.c.l.b16 %v194
        %v535 = vunpack.c.l.b16 %v195
        %v536 = vunpack.c.l.b16 %v196
        %v537 = vunpack.c.l.b16 %v197
        %v538 = vunpack.c.l.b16 %v198
        %v539 = vunpack.c.l.b16 %v199
        %v540 = vunpack.c.l.b16 %v200
        %v541 = vunpack.c.l.b16 %v201
        %v542 = vunpack.c.l.b16 %v202
        %v543 = vunpack.c.l.b16 %v203
        %v544 = vunpack.c.l.b16 %v204
        %v545 = vpack.c.b16 %v530, %v529
        %v546 = vpack.c.b16 %v532, %v531
        %v547 = vpack.c.b16 %v534, %v533
        %v548 = vpack.c.b16 %v536, %v535
        %v549 = vpack.c.b16 %v538, %v537
        %v550 = vpack.c.b16 %v540, %v539
        %v551 = vpack.c.b16 %v542, %v541
        %v552 = vpack.c.b16 %v544, %v543
        %v554 = vsel %vm435, %v545, 0
        %v557 = vsel %vm435, %v546, 0
        %v560 = vsel %vm435, %v547, 0
        %v563 = vsel %vm435, %v548, 0
        %v566 = vsel %vm435, %v549, 0
        %v569 = vsel %vm435, %v550, 0
        %v572 = vsel %vm435, %v551, 0
        %v575 = vsel %vm435, %v552, 0
        %v578 = vsel %vm460, %v205, 0
        %580 = vmatpush.bf16.msra.mxu0 0
        %581 = vmatpush.bf16.msra.mxu0 0
        %582 = vmatpush.bf16.msra.mxu0 0
        %583 = vmatpush.bf16.msra.mxu0 0
        %584 = vmatpush.bf16.msra.mxu0 0
        %585 = vmatpush.bf16.msra.mxu0 0
        %586 = vmatpush.bf16.msra.mxu0 0
        %587 = vmatpush.bf16.msra.mxu0 %v578
        %588 = vmatmul.bf16.gmra.mxu0 %v554
        %v589 = vpop.f32.mrf.mxu0
        %v590 = vadd.f32 %v474, %v589
        %v591 = vpop.f32.mrf.mxu0
        %v592 = vadd.f32 %v476, %v591
        %593 = vmatmul.bf16.gmra.mxu0 %v557
        %v594 = vpop.f32.mrf.mxu0
        %v595 = vadd.f32 %v479, %v594
        %v596 = vpop.f32.mrf.mxu0
        %v597 = vadd.f32 %v481, %v596
        %598 = vmatmul.bf16.gmra.mxu0 %v560
        %v599 = vpop.f32.mrf.mxu0
        %v600 = vadd.f32 %v484, %v599
        %v601 = vpop.f32.mrf.mxu0
        %v602 = vadd.f32 %v486, %v601
        %603 = vmatmul.bf16.gmra.mxu0 %v563
        %v604 = vpop.f32.mrf.mxu0
        %v605 = vadd.f32 %v489, %v604
        %v606 = vpop.f32.mrf.mxu0
        %v607 = vadd.f32 %v491, %v606
        %608 = vmatmul.bf16.gmra.mxu0 %v566
        %v609 = vpop.f32.mrf.mxu0
        %v610 = vadd.f32 %v494, %v609
        %v611 = vpop.f32.mrf.mxu0
        %v612 = vadd.f32 %v496, %v611
        %613 = vmatmul.bf16.gmra.mxu0 %v569
        %v614 = vpop.f32.mrf.mxu0
        %v615 = vadd.f32 %v499, %v614
        %v616 = vpop.f32.mrf.mxu0
        %v617 = vadd.f32 %v501, %v616
        %618 = vmatmul.bf16.gmra.mxu0 %v572
        %v619 = vpop.f32.mrf.mxu0
        %v620 = vadd.f32 %v504, %v619
        %v621 = vpop.f32.mrf.mxu0
        %v622 = vadd.f32 %v506, %v621
        %623 = vmatmul.bf16.gmra.mxu0 %v575
        %v624 = vpop.f32.mrf.mxu0
        %v625 = vadd.f32 %v509, %v624
        %v626 = vpop.f32.mrf.mxu0
        %v627 = vadd.f32 %v511, %v626
        %628 = vdwg.mxu0
        %v629 = vld [vmem:[%s188] sm:$0xe]
        %v630 = vld [vmem:[%s188 + $0xc] sm:$0xe]
        %v631 = vld [vmem:[%s188 + $0x18] sm:$0xe]
        %v632 = vld [vmem:[%s188 + $0x24] sm:$0xe]
        %v633 = vld [vmem:[%s188 + $0x30] sm:$0xe]
        %v634 = vld [vmem:[%s188 + $0x3c] sm:$0xe]
        %v635 = vld [vmem:[%s188 + $0x48] sm:$0xe]
        %v636 = vld [vmem:[%s188 + $0x54] sm:$0xe]
        %vm653 = vcmask 1042432
        %vm654 = vcmask 1046532
        %vm655 = vmor %vm653, %vm654
        %v656 = vrot.slane %v629, 5
        %v657 = vrot.slane %v656, 4
        %v658 = vrot.slane %v190, 5
        %v659 = vsel %vm655, %v657, %v658
        %v660 = vrot.slane %v658, 4
        %v661 = vrot.slane %v206, 5
        %v662 = vsel %vm655, %v660, %v661
        %v663 = vrot.slane %v630, 5
        %v664 = vrot.slane %v663, 4
        %v665 = vrot.slane %v192, 5
        %v666 = vsel %vm655, %v664, %v665
        %v667 = vrot.slane %v665, 4
        %v668 = vrot.slane %v207, 5
        %v669 = vsel %vm655, %v667, %v668
        %v670 = vrot.slane %v631, 5
        %v671 = vrot.slane %v670, 4
        %v672 = vrot.slane %v194, 5
        %v673 = vsel %vm655, %v671, %v672
        %v674 = vrot.slane %v672, 4
        %v675 = vrot.slane %v208, 5
        %v676 = vsel %vm655, %v674, %v675
        %v677 = vrot.slane %v632, 5
        %v678 = vrot.slane %v677, 4
        %v679 = vrot.slane %v196, 5
        %v680 = vsel %vm655, %v678, %v679
        %v681 = vrot.slane %v679, 4
        %v682 = vrot.slane %v209, 5
        %v683 = vsel %vm655, %v681, %v682
        %v684 = vrot.slane %v633, 5
        %v685 = vrot.slane %v684, 4
        %v686 = vrot.slane %v198, 5
        %v687 = vsel %vm655, %v685, %v686
        %v688 = vrot.slane %v686, 4
        %v689 = vrot.slane %v210, 5
        %v690 = vsel %vm655, %v688, %v689
        %v691 = vrot.slane %v634, 5
        %v692 = vrot.slane %v691, 4
        %v693 = vrot.slane %v200, 5
        %v694 = vsel %vm655, %v692, %v693
        %v695 = vrot.slane %v693, 4
        %v696 = vrot.slane %v211, 5
        %v697 = vsel %vm655, %v695, %v696
        %v698 = vrot.slane %v635, 5
        %v699 = vrot.slane %v698, 4
        %v700 = vrot.slane %v202, 5
        %v701 = vsel %vm655, %v699, %v700
        %v702 = vrot.slane %v700, 4
        %v703 = vrot.slane %v212, 5
        %v704 = vsel %vm655, %v702, %v703
        %v705 = vrot.slane %v636, 5
        %v706 = vrot.slane %v705, 4
        %v707 = vrot.slane %v204, 5
        %v708 = vsel %vm655, %v706, %v707
        %v709 = vrot.slane %v707, 4
        %v710 = vrot.slane %v213, 5
        %v711 = vsel %vm655, %v709, %v710
        %s712 = scalar_lea.vmem %s1, 4
        %v713 = vld [vmem:[%s712] sm:$0x3]
        %v714 = vunpack.c.l.b16 %v659
        %v715 = vunpack.c.l.b16 %v662
        %v716 = vunpack.c.l.b16 %v666
        %v717 = vunpack.c.l.b16 %v669
        %v718 = vunpack.c.l.b16 %v673
        %v719 = vunpack.c.l.b16 %v676
        %v720 = vunpack.c.l.b16 %v680
        %v721 = vunpack.c.l.b16 %v683
        %v722 = vunpack.c.l.b16 %v687
        %v723 = vunpack.c.l.b16 %v690
        %v724 = vunpack.c.l.b16 %v694
        %v725 = vunpack.c.l.b16 %v697
        %v726 = vunpack.c.l.b16 %v701
        %v727 = vunpack.c.l.b16 %v704
        %v728 = vunpack.c.l.b16 %v708
        %v729 = vunpack.c.l.b16 %v711
        %v730 = vpack.c.b16 %v715, %v714
        %v731 = vpack.c.b16 %v717, %v716
        %v732 = vpack.c.b16 %v719, %v718
        %v733 = vpack.c.b16 %v721, %v720
        %v734 = vpack.c.b16 %v723, %v722
        %v735 = vpack.c.b16 %v725, %v724
        %v736 = vpack.c.b16 %v727, %v726
        %v737 = vpack.c.b16 %v729, %v728
        %v739 = vsel %vm435, %v730, 0
        %v742 = vsel %vm435, %v731, 0
        %v745 = vsel %vm435, %v732, 0
        %v748 = vsel %vm435, %v733, 0
        %v751 = vsel %vm435, %v734, 0
        %v754 = vsel %vm435, %v735, 0
        %v757 = vsel %vm435, %v736, 0
        %v760 = vsel %vm435, %v737, 0
        %v763 = vsel %vm460, %v713, 0
        %765 = vmatpush.bf16.msra.mxu0 0
        %766 = vmatpush.bf16.msra.mxu0 0
        %767 = vmatpush.bf16.msra.mxu0 0
        %768 = vmatpush.bf16.msra.mxu0 0
        %769 = vmatpush.bf16.msra.mxu0 0
        %770 = vmatpush.bf16.msra.mxu0 0
        %771 = vmatpush.bf16.msra.mxu0 0
        %772 = vmatpush.bf16.msra.mxu0 %v763
        %773 = vmatmul.bf16.gmra.mxu0 %v739
        %v774 = vpop.f32.mrf.mxu0
        %v775 = vadd.f32 0.0, %v774
        %v776 = vpop.f32.mrf.mxu0
        %v777 = vadd.f32 0.0, %v776
        %778 = vmatmul.bf16.gmra.mxu0 %v742
        %v779 = vpop.f32.mrf.mxu0
        %v780 = vadd.f32 0.0, %v779
        %v781 = vpop.f32.mrf.mxu0
        %v782 = vadd.f32 0.0, %v781
        %783 = vmatmul.bf16.gmra.mxu0 %v745
        %v784 = vpop.f32.mrf.mxu0
        %v785 = vadd.f32 0.0, %v784
        %v786 = vpop.f32.mrf.mxu0
        %v787 = vadd.f32 0.0, %v786
        %788 = vmatmul.bf16.gmra.mxu0 %v748
        %v789 = vpop.f32.mrf.mxu0
        %v790 = vadd.f32 0.0, %v789
        %v791 = vpop.f32.mrf.mxu0
        %v792 = vadd.f32 0.0, %v791
        %793 = vmatmul.bf16.gmra.mxu0 %v751
        %v794 = vpop.f32.mrf.mxu0
        %v795 = vadd.f32 0.0, %v794
        %v796 = vpop.f32.mrf.mxu0
        %v797 = vadd.f32 0.0, %v796
        %798 = vmatmul.bf16.gmra.mxu0 %v754
        %v799 = vpop.f32.mrf.mxu0
        %v800 = vadd.f32 0.0, %v799
        %v801 = vpop.f32.mrf.mxu0
        %v802 = vadd.f32 0.0, %v801
        %803 = vmatmul.bf16.gmra.mxu0 %v757
        %v804 = vpop.f32.mrf.mxu0
        %v805 = vadd.f32 0.0, %v804
        %v806 = vpop.f32.mrf.mxu0
        %v807 = vadd.f32 0.0, %v806
        %808 = vmatmul.bf16.gmra.mxu0 %v760
        %v809 = vpop.f32.mrf.mxu0
        %v810 = vadd.f32 0.0, %v809
        %v811 = vpop.f32.mrf.mxu0
        %v812 = vadd.f32 0.0, %v811
        %813 = vdwg.mxu0
        %v814 = vadd.f32 %v590, %v775
        %v815 = vadd.f32 %v592, %v777
        %v816 = vadd.f32 %v595, %v780
        %v817 = vadd.f32 %v597, %v782
        %v818 = vadd.f32 %v600, %v785
        %v819 = vadd.f32 %v602, %v787
        %v820 = vadd.f32 %v605, %v790
        %v821 = vadd.f32 %v607, %v792
        %v822 = vadd.f32 %v610, %v795
        %v823 = vadd.f32 %v612, %v797
        %v824 = vadd.f32 %v615, %v800
        %v825 = vadd.f32 %v617, %v802
        %v826 = vadd.f32 %v620, %v805
        %v827 = vadd.f32 %v622, %v807
        %v828 = vadd.f32 %v625, %v810
        %v829 = vadd.f32 %v627, %v812
        %s830 = sadd.s32 %s185, 1
        %s831 = smul.u32 %s830, 3
        %s832 = smul.addr %s831, 4
        %s833 = scalar_lea.vmem %s182, %s832
        %v834 = vld [vmem:[%s833] sm:$0xf]
        %v835 = vld [vmem:[%s833 + $0x4] sm:$0xf]
        %v836 = vld [vmem:[%s833 + $0xc] sm:$0xf]
        %v837 = vld [vmem:[%s833 + $0x10] sm:$0xf]
        %v838 = vld [vmem:[%s833 + $0x18] sm:$0xf]
        %v839 = vld [vmem:[%s833 + $0x1c] sm:$0xf]
        %v840 = vld [vmem:[%s833 + $0x24] sm:$0xf]
        %v841 = vld [vmem:[%s833 + $0x28] sm:$0xf]
        %v842 = vld [vmem:[%s833 + $0x30] sm:$0xf]
        %v843 = vld [vmem:[%s833 + $0x34] sm:$0xf]
        %v844 = vld [vmem:[%s833 + $0x3c] sm:$0xf]
        %v845 = vld [vmem:[%s833 + $0x40] sm:$0xf]
        %v846 = vld [vmem:[%s833 + $0x48] sm:$0xf]
        %v847 = vld [vmem:[%s833 + $0x4c] sm:$0xf]
        %v848 = vld [vmem:[%s833 + $0x54] sm:$0xf]
        %v849 = vld [vmem:[%s833 + $0x58] sm:$0xf]
        %s850 = scalar_lea.vmem %s1, 6
        %v851 = vld [vmem:[%s850] sm:$0x3]
        %v868 = vunpack.c.l.b16 %v834
        %v869 = vunpack.c.l.b16 %v835
        %v870 = vunpack.c.l.b16 %v836
        %v871 = vunpack.c.l.b16 %v837
        %v872 = vunpack.c.l.b16 %v838
        %v873 = vunpack.c.l.b16 %v839
        %v874 = vunpack.c.l.b16 %v840
        %v875 = vunpack.c.l.b16 %v841
        %v876 = vunpack.c.l.b16 %v842
        %v877 = vunpack.c.l.b16 %v843
        %v878 = vunpack.c.l.b16 %v844
        %v879 = vunpack.c.l.b16 %v845
        %v880 = vunpack.c.l.b16 %v846
        %v881 = vunpack.c.l.b16 %v847
        %v882 = vunpack.c.l.b16 %v848
        %v883 = vunpack.c.l.b16 %v849
        %v884 = vpack.c.b16 %v869, %v868
        %v885 = vpack.c.b16 %v871, %v870
        %v886 = vpack.c.b16 %v873, %v872
        %v887 = vpack.c.b16 %v875, %v874
        %v888 = vpack.c.b16 %v877, %v876
        %v889 = vpack.c.b16 %v879, %v878
        %v890 = vpack.c.b16 %v881, %v880
        %v891 = vpack.c.b16 %v883, %v882
        %v893 = vsel %vm435, %v884, 0
        %v896 = vsel %vm435, %v885, 0
        %v899 = vsel %vm435, %v886, 0
        %v902 = vsel %vm435, %v887, 0
        %v905 = vsel %vm435, %v888, 0
        %v908 = vsel %vm435, %v889, 0
        %v911 = vsel %vm435, %v890, 0
        %v914 = vsel %vm435, %v891, 0
        %v917 = vsel %vm460, %v851, 0
        %919 = vmatpush.bf16.msra.mxu0 0
        %920 = vmatpush.bf16.msra.mxu0 0
        %921 = vmatpush.bf16.msra.mxu0 0
        %922 = vmatpush.bf16.msra.mxu0 0
        %923 = vmatpush.bf16.msra.mxu0 0
        %924 = vmatpush.bf16.msra.mxu0 0
        %925 = vmatpush.bf16.msra.mxu0 0
        %926 = vmatpush.bf16.msra.mxu0 %v917
        %927 = vmatmul.bf16.gmra.mxu0 %v893
        %v928 = vpop.f32.mrf.mxu0
        %v929 = vadd.f32 0.0, %v928
        %v930 = vpop.f32.mrf.mxu0
        %v931 = vadd.f32 0.0, %v930
        %932 = vmatmul.bf16.gmra.mxu0 %v896
        %v933 = vpop.f32.mrf.mxu0
        %v934 = vadd.f32 0.0, %v933
        %v935 = vpop.f32.mrf.mxu0
        %v936 = vadd.f32 0.0, %v935
        %937 = vmatmul.bf16.gmra.mxu0 %v899
        %v938 = vpop.f32.mrf.mxu0
        %v939 = vadd.f32 0.0, %v938
        %v940 = vpop.f32.mrf.mxu0
        %v941 = vadd.f32 0.0, %v940
        %942 = vmatmul.bf16.gmra.mxu0 %v902
        %v943 = vpop.f32.mrf.mxu0
        %v944 = vadd.f32 0.0, %v943
        %v945 = vpop.f32.mrf.mxu0
        %v946 = vadd.f32 0.0, %v945
        %947 = vmatmul.bf16.gmra.mxu0 %v905
        %v948 = vpop.f32.mrf.mxu0
        %v949 = vadd.f32 0.0, %v948
        %v950 = vpop.f32.mrf.mxu0
        %v951 = vadd.f32 0.0, %v950
        %952 = vmatmul.bf16.gmra.mxu0 %v908
        %v953 = vpop.f32.mrf.mxu0
        %v954 = vadd.f32 0.0, %v953
        %v955 = vpop.f32.mrf.mxu0
        %v956 = vadd.f32 0.0, %v955
        %957 = vmatmul.bf16.gmra.mxu0 %v911
        %v958 = vpop.f32.mrf.mxu0
        %v959 = vadd.f32 0.0, %v958
        %v960 = vpop.f32.mrf.mxu0
        %v961 = vadd.f32 0.0, %v960
        %962 = vmatmul.bf16.gmra.mxu0 %v914
        %v963 = vpop.f32.mrf.mxu0
        %v964 = vadd.f32 0.0, %v963
        %v965 = vpop.f32.mrf.mxu0
        %v966 = vadd.f32 0.0, %v965
        %967 = vdwg.mxu0
        %v968 = vadd.f32 %v814, %v929
        %v969 = vadd.f32 %v815, %v931
        %v970 = vadd.f32 %v816, %v934
        %v971 = vadd.f32 %v817, %v936
        %v972 = vadd.f32 %v818, %v939
        %v973 = vadd.f32 %v819, %v941
        %v974 = vadd.f32 %v820, %v944
        %v975 = vadd.f32 %v821, %v946
        %v976 = vadd.f32 %v822, %v949
        %v977 = vadd.f32 %v823, %v951
        %v978 = vadd.f32 %v824, %v954
        %v979 = vadd.f32 %v825, %v956
        %v980 = vadd.f32 %v826, %v959
        %v981 = vadd.f32 %v827, %v961
        %v982 = vadd.f32 %v828, %v964
        %v983 = vadd.f32 %v829, %v966
        %v984 = vld [vmem:[%s833] sm:$0xf]
        %v985 = vld [vmem:[%s833 + $0x4] sm:$0xf]
        %v986 = vld [vmem:[%s833 + $0x8] sm:$0x1]
        %v987 = vld [vmem:[%s833 + $0xc] sm:$0xf]
        %v988 = vld [vmem:[%s833 + $0x10] sm:$0xf]
        %v989 = vld [vmem:[%s833 + $0x14] sm:$0x1]
        %v990 = vld [vmem:[%s833 + $0x18] sm:$0xf]
        %v991 = vld [vmem:[%s833 + $0x1c] sm:$0xf]
        %v992 = vld [vmem:[%s833 + $0x20] sm:$0x1]
        %v993 = vld [vmem:[%s833 + $0x24] sm:$0xf]
        %v994 = vld [vmem:[%s833 + $0x28] sm:$0xf]
        %v995 = vld [vmem:[%s833 + $0x2c] sm:$0x1]
        %v996 = vld [vmem:[%s833 + $0x30] sm:$0xf]
        %v997 = vld [vmem:[%s833 + $0x34] sm:$0xf]
        %v998 = vld [vmem:[%s833 + $0x38] sm:$0x1]
        %v999 = vld [vmem:[%s833 + $0x3c] sm:$0xf]
        %v1000 = vld [vmem:[%s833 + $0x40] sm:$0xf]
        %v1001 = vld [vmem:[%s833 + $0x44] sm:$0x1]
        %v1002 = vld [vmem:[%s833 + $0x48] sm:$0xf]
        %v1003 = vld [vmem:[%s833 + $0x4c] sm:$0xf]
        %v1004 = vld [vmem:[%s833 + $0x50] sm:$0x1]
        %v1005 = vld [vmem:[%s833 + $0x54] sm:$0xf]
        %v1006 = vld [vmem:[%s833 + $0x58] sm:$0xf]
        %v1007 = vld [vmem:[%s833 + $0x5c] sm:$0x1]
        %v1009 = vshrl.u32 %v984, 16
        %v1011 = vrot.slane %v1009, 4
        %v1012 = vshll.u32 %v984, 16
        %v1014 = vrot.slane %v1012, 5
        %v1015 = vor.u32 %v1011, %v1014
        %v1016 = vrot.slane %v1015, 4
        %v1018 = vshll.u32 %v985, 16
        %v1020 = vrot.slane %v1018, 5
        %v1021 = vsel %vm216, %v1016, %v1020
        %v1022 = vshrl.u32 %v985, 16
        %v1024 = vrot.slane %v1022, 4
        %v1025 = vor.u32 %v1024, %v1020
        %v1026 = vrot.slane %v1025, 4
        %v1028 = vshll.u32 %v986, 16
        %v1030 = vrot.slane %v1028, 5
        %v1031 = vsel %vm216, %v1026, %v1030
        %v1033 = vshrl.u32 %v987, 16
        %v1035 = vrot.slane %v1033, 4
        %v1036 = vshll.u32 %v987, 16
        %v1038 = vrot.slane %v1036, 5
        %v1039 = vor.u32 %v1035, %v1038
        %v1040 = vrot.slane %v1039, 4
        %v1042 = vshll.u32 %v988, 16
        %v1044 = vrot.slane %v1042, 5
        %v1045 = vsel %vm216, %v1040, %v1044
        %v1046 = vshrl.u32 %v988, 16
        %v1048 = vrot.slane %v1046, 4
        %v1049 = vor.u32 %v1048, %v1044
        %v1050 = vrot.slane %v1049, 4
        %v1052 = vshll.u32 %v989, 16
        %v1054 = vrot.slane %v1052, 5
        %v1055 = vsel %vm216, %v1050, %v1054
        %v1057 = vshrl.u32 %v990, 16
        %v1059 = vrot.slane %v1057, 4
        %v1060 = vshll.u32 %v990, 16
        %v1062 = vrot.slane %v1060, 5
        %v1063 = vor.u32 %v1059, %v1062
        %v1064 = vrot.slane %v1063, 4
        %v1066 = vshll.u32 %v991, 16
        %v1068 = vrot.slane %v1066, 5
        %v1069 = vsel %vm216, %v1064, %v1068
        %v1070 = vshrl.u32 %v991, 16
        %v1072 = vrot.slane %v1070, 4
        %v1073 = vor.u32 %v1072, %v1068
        %v1074 = vrot.slane %v1073, 4
        %v1076 = vshll.u32 %v992, 16
        %v1078 = vrot.slane %v1076, 5
        %v1079 = vsel %vm216, %v1074, %v1078
        %v1081 = vshrl.u32 %v993, 16
        %v1083 = vrot.slane %v1081, 4
        %v1084 = vshll.u32 %v993, 16
        %v1086 = vrot.slane %v1084, 5
        %v1087 = vor.u32 %v1083, %v1086
        %v1088 = vrot.slane %v1087, 4
        %v1090 = vshll.u32 %v994, 16
        %v1092 = vrot.slane %v1090, 5
        %v1093 = vsel %vm216, %v1088, %v1092
        %v1094 = vshrl.u32 %v994, 16
        %v1096 = vrot.slane %v1094, 4
        %v1097 = vor.u32 %v1096, %v1092
        %v1098 = vrot.slane %v1097, 4
        %v1100 = vshll.u32 %v995, 16
        %v1102 = vrot.slane %v1100, 5
        %v1103 = vsel %vm216, %v1098, %v1102
        %v1105 = vshrl.u32 %v996, 16
        %v1107 = vrot.slane %v1105, 4
        %v1108 = vshll.u32 %v996, 16
        %v1110 = vrot.slane %v1108, 5
        %v1111 = vor.u32 %v1107, %v1110
        %v1112 = vrot.slane %v1111, 4
        %v1114 = vshll.u32 %v997, 16
        %v1116 = vrot.slane %v1114, 5
        %v1117 = vsel %vm216, %v1112, %v1116
        %v1118 = vshrl.u32 %v997, 16
        %v1120 = vrot.slane %v1118, 4
        %v1121 = vor.u32 %v1120, %v1116
        %v1122 = vrot.slane %v1121, 4
        %v1124 = vshll.u32 %v998, 16
        %v1126 = vrot.slane %v1124, 5
        %v1127 = vsel %vm216, %v1122, %v1126
        %v1129 = vshrl.u32 %v999, 16
        %v1131 = vrot.slane %v1129, 4
        %v1132 = vshll.u32 %v999, 16
        %v1134 = vrot.slane %v1132, 5
        %v1135 = vor.u32 %v1131, %v1134
        %v1136 = vrot.slane %v1135, 4
        %v1138 = vshll.u32 %v1000, 16
        %v1140 = vrot.slane %v1138, 5
        %v1141 = vsel %vm216, %v1136, %v1140
        %v1142 = vshrl.u32 %v1000, 16
        %v1144 = vrot.slane %v1142, 4
        %v1145 = vor.u32 %v1144, %v1140
        %v1146 = vrot.slane %v1145, 4
        %v1148 = vshll.u32 %v1001, 16
        %v1150 = vrot.slane %v1148, 5
        %v1151 = vsel %vm216, %v1146, %v1150
        %v1153 = vshrl.u32 %v1002, 16
        %v1155 = vrot.slane %v1153, 4
        %v1156 = vshll.u32 %v1002, 16
        %v1158 = vrot.slane %v1156, 5
        %v1159 = vor.u32 %v1155, %v1158
        %v1160 = vrot.slane %v1159, 4
        %v1162 = vshll.u32 %v1003, 16
        %v1164 = vrot.slane %v1162, 5
        %v1165 = vsel %vm216, %v1160, %v1164
        %v1166 = vshrl.u32 %v1003, 16
        %v1168 = vrot.slane %v1166, 4
        %v1169 = vor.u32 %v1168, %v1164
        %v1170 = vrot.slane %v1169, 4
        %v1172 = vshll.u32 %v1004, 16
        %v1174 = vrot.slane %v1172, 5
        %v1175 = vsel %vm216, %v1170, %v1174
        %v1177 = vshrl.u32 %v1005, 16
        %v1179 = vrot.slane %v1177, 4
        %v1180 = vshll.u32 %v1005, 16
        %v1182 = vrot.slane %v1180, 5
        %v1183 = vor.u32 %v1179, %v1182
        %v1184 = vrot.slane %v1183, 4
        %v1186 = vshll.u32 %v1006, 16
        %v1188 = vrot.slane %v1186, 5
        %v1189 = vsel %vm216, %v1184, %v1188
        %v1190 = vshrl.u32 %v1006, 16
        %v1192 = vrot.slane %v1190, 4
        %v1193 = vor.u32 %v1192, %v1188
        %v1194 = vrot.slane %v1193, 4
        %v1196 = vshll.u32 %v1007, 16
        %v1198 = vrot.slane %v1196, 5
        %v1199 = vsel %vm216, %v1194, %v1198
        %s1200 = scalar_lea.vmem %s1, 8
        %v1201 = vld [vmem:[%s1200] sm:$0x3]
        %v1202 = vunpack.c.l.b16 %v1021
        %v1203 = vunpack.c.l.b16 %v1031
        %v1204 = vunpack.c.l.b16 %v1045
        %v1205 = vunpack.c.l.b16 %v1055
        %v1206 = vunpack.c.l.b16 %v1069
        %v1207 = vunpack.c.l.b16 %v1079
        %v1208 = vunpack.c.l.b16 %v1093
        %v1209 = vunpack.c.l.b16 %v1103
        %v1210 = vunpack.c.l.b16 %v1117
        %v1211 = vunpack.c.l.b16 %v1127
        %v1212 = vunpack.c.l.b16 %v1141
        %v1213 = vunpack.c.l.b16 %v1151
        %v1214 = vunpack.c.l.b16 %v1165
        %v1215 = vunpack.c.l.b16 %v1175
        %v1216 = vunpack.c.l.b16 %v1189
        %v1217 = vunpack.c.l.b16 %v1199
        %v1218 = vpack.c.b16 %v1203, %v1202
        %v1219 = vpack.c.b16 %v1205, %v1204
        %v1220 = vpack.c.b16 %v1207, %v1206
        %v1221 = vpack.c.b16 %v1209, %v1208
        %v1222 = vpack.c.b16 %v1211, %v1210
        %v1223 = vpack.c.b16 %v1213, %v1212
        %v1224 = vpack.c.b16 %v1215, %v1214
        %v1225 = vpack.c.b16 %v1217, %v1216
        %v1227 = vsel %vm435, %v1218, 0
        %v1230 = vsel %vm435, %v1219, 0
        %v1233 = vsel %vm435, %v1220, 0
        %v1236 = vsel %vm435, %v1221, 0
        %v1239 = vsel %vm435, %v1222, 0
        %v1242 = vsel %vm435, %v1223, 0
        %v1245 = vsel %vm435, %v1224, 0
        %v1248 = vsel %vm435, %v1225, 0
        %v1251 = vsel %vm460, %v1201, 0
        %1253 = vmatpush.bf16.msra.mxu0 0
        %1254 = vmatpush.bf16.msra.mxu0 0
        %1255 = vmatpush.bf16.msra.mxu0 0
        %1256 = vmatpush.bf16.msra.mxu0 0
        %1257 = vmatpush.bf16.msra.mxu0 0
        %1258 = vmatpush.bf16.msra.mxu0 0
        %1259 = vmatpush.bf16.msra.mxu0 0
        %1260 = vmatpush.bf16.msra.mxu0 %v1251
        %1261 = vmatmul.bf16.gmra.mxu0 %v1227
        %v1262 = vpop.f32.mrf.mxu0
        %v1263 = vadd.f32 0.0, %v1262
        %v1264 = vpop.f32.mrf.mxu0
        %v1265 = vadd.f32 0.0, %v1264
        %1266 = vmatmul.bf16.gmra.mxu0 %v1230
        %v1267 = vpop.f32.mrf.mxu0
        %v1268 = vadd.f32 0.0, %v1267
        %v1269 = vpop.f32.mrf.mxu0
        %v1270 = vadd.f32 0.0, %v1269
        %1271 = vmatmul.bf16.gmra.mxu0 %v1233
        %v1272 = vpop.f32.mrf.mxu0
        %v1273 = vadd.f32 0.0, %v1272
        %v1274 = vpop.f32.mrf.mxu0
        %v1275 = vadd.f32 0.0, %v1274
        %1276 = vmatmul.bf16.gmra.mxu0 %v1236
        %v1277 = vpop.f32.mrf.mxu0
        %v1278 = vadd.f32 0.0, %v1277
        %v1279 = vpop.f32.mrf.mxu0
        %v1280 = vadd.f32 0.0, %v1279
        %1281 = vmatmul.bf16.gmra.mxu0 %v1239
        %v1282 = vpop.f32.mrf.mxu0
        %v1283 = vadd.f32 0.0, %v1282
        %v1284 = vpop.f32.mrf.mxu0
        %v1285 = vadd.f32 0.0, %v1284
        %1286 = vmatmul.bf16.gmra.mxu0 %v1242
        %v1287 = vpop.f32.mrf.mxu0
        %v1288 = vadd.f32 0.0, %v1287
        %v1289 = vpop.f32.mrf.mxu0
        %v1290 = vadd.f32 0.0, %v1289
        %1291 = vmatmul.bf16.gmra.mxu0 %v1245
        %v1292 = vpop.f32.mrf.mxu0
        %v1293 = vadd.f32 0.0, %v1292
        %v1294 = vpop.f32.mrf.mxu0
        %v1295 = vadd.f32 0.0, %v1294
        %1296 = vmatmul.bf16.gmra.mxu0 %v1248
        %v1297 = vpop.f32.mrf.mxu0
        %v1298 = vadd.f32 0.0, %v1297
        %v1299 = vpop.f32.mrf.mxu0
        %v1300 = vadd.f32 0.0, %v1299
        %1301 = vdwg.mxu0
        %v1302 = vadd.f32 %v968, %v1263
        %v1303 = vadd.f32 %v969, %v1265
        %v1304 = vadd.f32 %v970, %v1268
        %v1305 = vadd.f32 %v971, %v1270
        %v1306 = vadd.f32 %v972, %v1273
        %v1307 = vadd.f32 %v973, %v1275
        %v1308 = vadd.f32 %v974, %v1278
        %v1309 = vadd.f32 %v975, %v1280
        %v1310 = vadd.f32 %v976, %v1283
        %v1311 = vadd.f32 %v977, %v1285
        %v1312 = vadd.f32 %v978, %v1288
        %v1313 = vadd.f32 %v979, %v1290
        %v1314 = vadd.f32 %v980, %v1293
        %v1315 = vadd.f32 %v981, %v1295
        %v1316 = vadd.f32 %v982, %v1298
        %v1317 = vadd.f32 %v983, %v1300
        %v1318 = vld [vmem:[%s833] sm:$0xe]
        %v1319 = vld [vmem:[%s833 + $0xc] sm:$0xe]
        %v1320 = vld [vmem:[%s833 + $0x18] sm:$0xe]
        %v1321 = vld [vmem:[%s833 + $0x24] sm:$0xe]
        %v1322 = vld [vmem:[%s833 + $0x30] sm:$0xe]
        %v1323 = vld [vmem:[%s833 + $0x3c] sm:$0xe]
        %v1324 = vld [vmem:[%s833 + $0x48] sm:$0xe]
        %v1325 = vld [vmem:[%s833 + $0x54] sm:$0xe]
        %v1350 = vrot.slane %v1318, 5
        %v1351 = vrot.slane %v1350, 4
        %v1352 = vrot.slane %v985, 5
        %v1353 = vsel %vm655, %v1351, %v1352
        %v1354 = vrot.slane %v1352, 4
        %v1355 = vrot.slane %v986, 5
        %v1356 = vsel %vm655, %v1354, %v1355
        %v1357 = vrot.slane %v1319, 5
        %v1358 = vrot.slane %v1357, 4
        %v1359 = vrot.slane %v988, 5
        %v1360 = vsel %vm655, %v1358, %v1359
        %v1361 = vrot.slane %v1359, 4
        %v1362 = vrot.slane %v989, 5
        %v1363 = vsel %vm655, %v1361, %v1362
        %v1364 = vrot.slane %v1320, 5
        %v1365 = vrot.slane %v1364, 4
        %v1366 = vrot.slane %v991, 5
        %v1367 = vsel %vm655, %v1365, %v1366
        %v1368 = vrot.slane %v1366, 4
        %v1369 = vrot.slane %v992, 5
        %v1370 = vsel %vm655, %v1368, %v1369
        %v1371 = vrot.slane %v1321, 5
        %v1372 = vrot.slane %v1371, 4
        %v1373 = vrot.slane %v994, 5
        %v1374 = vsel %vm655, %v1372, %v1373
        %v1375 = vrot.slane %v1373, 4
        %v1376 = vrot.slane %v995, 5
        %v1377 = vsel %vm655, %v1375, %v1376
        %v1378 = vrot.slane %v1322, 5
        %v1379 = vrot.slane %v1378, 4
        %v1380 = vrot.slane %v997, 5
        %v1381 = vsel %vm655, %v1379, %v1380
        %v1382 = vrot.slane %v1380, 4
        %v1383 = vrot.slane %v998, 5
        %v1384 = vsel %vm655, %v1382, %v1383
        %v1385 = vrot.slane %v1323, 5
        %v1386 = vrot.slane %v1385, 4
        %v1387 = vrot.slane %v1000, 5
        %v1388 = vsel %vm655, %v1386, %v1387
        %v1389 = vrot.slane %v1387, 4
        %v1390 = vrot.slane %v1001, 5
        %v1391 = vsel %vm655, %v1389, %v1390
        %v1392 = vrot.slane %v1324, 5
        %v1393 = vrot.slane %v1392, 4
        %v1394 = vrot.slane %v1003, 5
        %v1395 = vsel %vm655, %v1393, %v1394
        %v1396 = vrot.slane %v1394, 4
        %v1397 = vrot.slane %v1004, 5
        %v1398 = vsel %vm655, %v1396, %v1397
        %v1399 = vrot.slane %v1325, 5
        %v1400 = vrot.slane %v1399, 4
        %v1401 = vrot.slane %v1006, 5
        %v1402 = vsel %vm655, %v1400, %v1401
        %v1403 = vrot.slane %v1401, 4
        %v1404 = vrot.slane %v1007, 5
        %v1405 = vsel %vm655, %v1403, %v1404
        %s1406 = scalar_lea.vmem %s1, 10
        %v1407 = vld [vmem:[%s1406] sm:$0x3]
        %v1408 = vunpack.c.l.b16 %v1353
        %v1409 = vunpack.c.l.b16 %v1356
        %v1410 = vunpack.c.l.b16 %v1360
        %v1411 = vunpack.c.l.b16 %v1363
        %v1412 = vunpack.c.l.b16 %v1367
        %v1413 = vunpack.c.l.b16 %v1370
        %v1414 = vunpack.c.l.b16 %v1374
        %v1415 = vunpack.c.l.b16 %v1377
        %v1416 = vunpack.c.l.b16 %v1381
        %v1417 = vunpack.c.l.b16 %v1384
        %v1418 = vunpack.c.l.b16 %v1388
        %v1419 = vunpack.c.l.b16 %v1391
        %v1420 = vunpack.c.l.b16 %v1395
        %v1421 = vunpack.c.l.b16 %v1398
        %v1422 = vunpack.c.l.b16 %v1402
        %v1423 = vunpack.c.l.b16 %v1405
        %v1424 = vpack.c.b16 %v1409, %v1408
        %v1425 = vpack.c.b16 %v1411, %v1410
        %v1426 = vpack.c.b16 %v1413, %v1412
        %v1427 = vpack.c.b16 %v1415, %v1414
        %v1428 = vpack.c.b16 %v1417, %v1416
        %v1429 = vpack.c.b16 %v1419, %v1418
        %v1430 = vpack.c.b16 %v1421, %v1420
        %v1431 = vpack.c.b16 %v1423, %v1422
        %v1433 = vsel %vm435, %v1424, 0
        %v1436 = vsel %vm435, %v1425, 0
        %v1439 = vsel %vm435, %v1426, 0
        %v1442 = vsel %vm435, %v1427, 0
        %v1445 = vsel %vm435, %v1428, 0
        %v1448 = vsel %vm435, %v1429, 0
        %v1451 = vsel %vm435, %v1430, 0
        %v1454 = vsel %vm435, %v1431, 0
        %v1457 = vsel %vm460, %v1407, 0
        %1459 = vmatpush.bf16.msra.mxu0 0
        %1460 = vmatpush.bf16.msra.mxu0 0
        %1461 = vmatpush.bf16.msra.mxu0 0
        %1462 = vmatpush.bf16.msra.mxu0 0
        %1463 = vmatpush.bf16.msra.mxu0 0
        %1464 = vmatpush.bf16.msra.mxu0 0
        %1465 = vmatpush.bf16.msra.mxu0 0
        %1466 = vmatpush.bf16.msra.mxu0 %v1457
        %1467 = vmatmul.bf16.gmra.mxu0 %v1433
        %v1468 = vpop.f32.mrf.mxu0
        %v1469 = vadd.f32 0.0, %v1468
        %v1470 = vpop.f32.mrf.mxu0
        %v1471 = vadd.f32 0.0, %v1470
        %1472 = vmatmul.bf16.gmra.mxu0 %v1436
        %v1473 = vpop.f32.mrf.mxu0
        %v1474 = vadd.f32 0.0, %v1473
        %v1475 = vpop.f32.mrf.mxu0
        %v1476 = vadd.f32 0.0, %v1475
        %1477 = vmatmul.bf16.gmra.mxu0 %v1439
        %v1478 = vpop.f32.mrf.mxu0
        %v1479 = vadd.f32 0.0, %v1478
        %v1480 = vpop.f32.mrf.mxu0
        %v1481 = vadd.f32 0.0, %v1480
        %1482 = vmatmul.bf16.gmra.mxu0 %v1442
        %v1483 = vpop.f32.mrf.mxu0
        %v1484 = vadd.f32 0.0, %v1483
        %v1485 = vpop.f32.mrf.mxu0
        %v1486 = vadd.f32 0.0, %v1485
        %1487 = vmatmul.bf16.gmra.mxu0 %v1445
        %v1488 = vpop.f32.mrf.mxu0
        %v1489 = vadd.f32 0.0, %v1488
        %v1490 = vpop.f32.mrf.mxu0
        %v1491 = vadd.f32 0.0, %v1490
        %1492 = vmatmul.bf16.gmra.mxu0 %v1448
        %v1493 = vpop.f32.mrf.mxu0
        %v1494 = vadd.f32 0.0, %v1493
        %v1495 = vpop.f32.mrf.mxu0
        %v1496 = vadd.f32 0.0, %v1495
        %1497 = vmatmul.bf16.gmra.mxu0 %v1451
        %v1498 = vpop.f32.mrf.mxu0
        %v1499 = vadd.f32 0.0, %v1498
        %v1500 = vpop.f32.mrf.mxu0
        %v1501 = vadd.f32 0.0, %v1500
        %1502 = vmatmul.bf16.gmra.mxu0 %v1454
        %v1503 = vpop.f32.mrf.mxu0
        %v1504 = vadd.f32 0.0, %v1503
        %v1505 = vpop.f32.mrf.mxu0
        %v1506 = vadd.f32 0.0, %v1505
        %1507 = vdwg.mxu0
        %v1508 = vadd.f32 %v1302, %v1469
        %v1509 = vadd.f32 %v1303, %v1471
        %v1510 = vadd.f32 %v1304, %v1474
        %v1511 = vadd.f32 %v1305, %v1476
        %v1512 = vadd.f32 %v1306, %v1479
        %v1513 = vadd.f32 %v1307, %v1481
        %v1514 = vadd.f32 %v1308, %v1484
        %v1515 = vadd.f32 %v1309, %v1486
        %v1516 = vadd.f32 %v1310, %v1489
        %v1517 = vadd.f32 %v1311, %v1491
        %v1518 = vadd.f32 %v1312, %v1494
        %v1519 = vadd.f32 %v1313, %v1496
        %v1520 = vadd.f32 %v1314, %v1499
        %v1521 = vadd.f32 %v1315, %v1501
        %v1522 = vadd.f32 %v1316, %v1504
        %v1523 = vadd.f32 %v1317, %v1506
        %s1524 = sadd.s32 %s185, 2
        %s1525 = smul.u32 %s1524, 3
        %s1526 = smul.addr %s1525, 4
        %s1527 = scalar_lea.vmem %s182, %s1526
        %v1528 = vld [vmem:[%s1527] sm:$0xf]
        %v1529 = vld [vmem:[%s1527 + $0x4] sm:$0xf]
        %v1530 = vld [vmem:[%s1527 + $0xc] sm:$0xf]
        %v1531 = vld [vmem:[%s1527 + $0x10] sm:$0xf]
        %v1532 = vld [vmem:[%s1527 + $0x18] sm:$0xf]
        %v1533 = vld [vmem:[%s1527 + $0x1c] sm:$0xf]
        %v1534 = vld [vmem:[%s1527 + $0x24] sm:$0xf]
        %v1535 = vld [vmem:[%s1527 + $0x28] sm:$0xf]
        %v1536 = vld [vmem:[%s1527 + $0x30] sm:$0xf]
        %v1537 = vld [vmem:[%s1527 + $0x34] sm:$0xf]
        %v1538 = vld [vmem:[%s1527 + $0x3c] sm:$0xf]
        %v1539 = vld [vmem:[%s1527 + $0x40] sm:$0xf]
        %v1540 = vld [vmem:[%s1527 + $0x48] sm:$0xf]
        %v1541 = vld [vmem:[%s1527 + $0x4c] sm:$0xf]
        %v1542 = vld [vmem:[%s1527 + $0x54] sm:$0xf]
        %v1543 = vld [vmem:[%s1527 + $0x58] sm:$0xf]
        %s1544 = scalar_lea.vmem %s1, 12
        %v1545 = vld [vmem:[%s1544] sm:$0x3]
        %v1562 = vunpack.c.l.b16 %v1528
        %v1563 = vunpack.c.l.b16 %v1529
        %v1564 = vunpack.c.l.b16 %v1530
        %v1565 = vunpack.c.l.b16 %v1531
        %v1566 = vunpack.c.l.b16 %v1532
        %v1567 = vunpack.c.l.b16 %v1533
        %v1568 = vunpack.c.l.b16 %v1534
        %v1569 = vunpack.c.l.b16 %v1535
        %v1570 = vunpack.c.l.b16 %v1536
        %v1571 = vunpack.c.l.b16 %v1537
        %v1572 = vunpack.c.l.b16 %v1538
        %v1573 = vunpack.c.l.b16 %v1539
        %v1574 = vunpack.c.l.b16 %v1540
        %v1575 = vunpack.c.l.b16 %v1541
        %v1576 = vunpack.c.l.b16 %v1542
        %v1577 = vunpack.c.l.b16 %v1543
        %v1578 = vpack.c.b16 %v1563, %v1562
        %v1579 = vpack.c.b16 %v1565, %v1564
        %v1580 = vpack.c.b16 %v1567, %v1566
        %v1581 = vpack.c.b16 %v1569, %v1568
        %v1582 = vpack.c.b16 %v1571, %v1570
        %v1583 = vpack.c.b16 %v1573, %v1572
        %v1584 = vpack.c.b16 %v1575, %v1574
        %v1585 = vpack.c.b16 %v1577, %v1576
        %v1587 = vsel %vm435, %v1578, 0
        %v1590 = vsel %vm435, %v1579, 0
        %v1593 = vsel %vm435, %v1580, 0
        %v1596 = vsel %vm435, %v1581, 0
        %v1599 = vsel %vm435, %v1582, 0
        %v1602 = vsel %vm435, %v1583, 0
        %v1605 = vsel %vm435, %v1584, 0
        %v1608 = vsel %vm435, %v1585, 0
        %v1611 = vsel %vm460, %v1545, 0
        %1613 = vmatpush.bf16.msra.mxu0 0
        %1614 = vmatpush.bf16.msra.mxu0 0
        %1615 = vmatpush.bf16.msra.mxu0 0
        %1616 = vmatpush.bf16.msra.mxu0 0
        %1617 = vmatpush.bf16.msra.mxu0 0
        %1618 = vmatpush.bf16.msra.mxu0 0
        %1619 = vmatpush.bf16.msra.mxu0 0
        %1620 = vmatpush.bf16.msra.mxu0 %v1611
        %1621 = vmatmul.bf16.gmra.mxu0 %v1587
        %v1622 = vpop.f32.mrf.mxu0
        %v1623 = vadd.f32 0.0, %v1622
        %v1624 = vpop.f32.mrf.mxu0
        %v1625 = vadd.f32 0.0, %v1624
        %1626 = vmatmul.bf16.gmra.mxu0 %v1590
        %v1627 = vpop.f32.mrf.mxu0
        %v1628 = vadd.f32 0.0, %v1627
        %v1629 = vpop.f32.mrf.mxu0
        %v1630 = vadd.f32 0.0, %v1629
        %1631 = vmatmul.bf16.gmra.mxu0 %v1593
        %v1632 = vpop.f32.mrf.mxu0
        %v1633 = vadd.f32 0.0, %v1632
        %v1634 = vpop.f32.mrf.mxu0
        %v1635 = vadd.f32 0.0, %v1634
        %1636 = vmatmul.bf16.gmra.mxu0 %v1596
        %v1637 = vpop.f32.mrf.mxu0
        %v1638 = vadd.f32 0.0, %v1637
        %v1639 = vpop.f32.mrf.mxu0
        %v1640 = vadd.f32 0.0, %v1639
        %1641 = vmatmul.bf16.gmra.mxu0 %v1599
        %v1642 = vpop.f32.mrf.mxu0
        %v1643 = vadd.f32 0.0, %v1642
        %v1644 = vpop.f32.mrf.mxu0
        %v1645 = vadd.f32 0.0, %v1644
        %1646 = vmatmul.bf16.gmra.mxu0 %v1602
        %v1647 = vpop.f32.mrf.mxu0
        %v1648 = vadd.f32 0.0, %v1647
        %v1649 = vpop.f32.mrf.mxu0
        %v1650 = vadd.f32 0.0, %v1649
        %1651 = vmatmul.bf16.gmra.mxu0 %v1605
        %v1652 = vpop.f32.mrf.mxu0
        %v1653 = vadd.f32 0.0, %v1652
        %v1654 = vpop.f32.mrf.mxu0
        %v1655 = vadd.f32 0.0, %v1654
        %1656 = vmatmul.bf16.gmra.mxu0 %v1608
        %v1657 = vpop.f32.mrf.mxu0
        %v1658 = vadd.f32 0.0, %v1657
        %v1659 = vpop.f32.mrf.mxu0
        %v1660 = vadd.f32 0.0, %v1659
        %1661 = vdwg.mxu0
        %v1662 = vadd.f32 %v1508, %v1623
        %v1663 = vadd.f32 %v1509, %v1625
        %v1664 = vadd.f32 %v1510, %v1628
        %v1665 = vadd.f32 %v1511, %v1630
        %v1666 = vadd.f32 %v1512, %v1633
        %v1667 = vadd.f32 %v1513, %v1635
        %v1668 = vadd.f32 %v1514, %v1638
        %v1669 = vadd.f32 %v1515, %v1640
        %v1670 = vadd.f32 %v1516, %v1643
        %v1671 = vadd.f32 %v1517, %v1645
        %v1672 = vadd.f32 %v1518, %v1648
        %v1673 = vadd.f32 %v1519, %v1650
        %v1674 = vadd.f32 %v1520, %v1653
        %v1675 = vadd.f32 %v1521, %v1655
        %v1676 = vadd.f32 %v1522, %v1658
        %v1677 = vadd.f32 %v1523, %v1660
        %v1678 = vld [vmem:[%s1527] sm:$0xf]
        %v1679 = vld [vmem:[%s1527 + $0x4] sm:$0xf]
        %v1680 = vld [vmem:[%s1527 + $0x8] sm:$0x1]
        %v1681 = vld [vmem:[%s1527 + $0xc] sm:$0xf]
        %v1682 = vld [vmem:[%s1527 + $0x10] sm:$0xf]
        %v1683 = vld [vmem:[%s1527 + $0x14] sm:$0x1]
        %v1684 = vld [vmem:[%s1527 + $0x18] sm:$0xf]
        %v1685 = vld [vmem:[%s1527 + $0x1c] sm:$0xf]
        %v1686 = vld [vmem:[%s1527 + $0x20] sm:$0x1]
        %v1687 = vld [vmem:[%s1527 + $0x24] sm:$0xf]
        %v1688 = vld [vmem:[%s1527 + $0x28] sm:$0xf]
        %v1689 = vld [vmem:[%s1527 + $0x2c] sm:$0x1]
        %v1690 = vld [vmem:[%s1527 + $0x30] sm:$0xf]
        %v1691 = vld [vmem:[%s1527 + $0x34] sm:$0xf]
        %v1692 = vld [vmem:[%s1527 + $0x38] sm:$0x1]
        %v1693 = vld [vmem:[%s1527 + $0x3c] sm:$0xf]
        %v1694 = vld [vmem:[%s1527 + $0x40] sm:$0xf]
        %v1695 = vld [vmem:[%s1527 + $0x44] sm:$0x1]
        %v1696 = vld [vmem:[%s1527 + $0x48] sm:$0xf]
        %v1697 = vld [vmem:[%s1527 + $0x4c] sm:$0xf]
        %v1698 = vld [vmem:[%s1527 + $0x50] sm:$0x1]
        %v1699 = vld [vmem:[%s1527 + $0x54] sm:$0xf]
        %v1700 = vld [vmem:[%s1527 + $0x58] sm:$0xf]
        %v1701 = vld [vmem:[%s1527 + $0x5c] sm:$0x1]
        %v1703 = vshrl.u32 %v1678, 16
        %v1705 = vrot.slane %v1703, 4
        %v1706 = vshll.u32 %v1678, 16
        %v1708 = vrot.slane %v1706, 5
        %v1709 = vor.u32 %v1705, %v1708
        %v1710 = vrot.slane %v1709, 4
        %v1712 = vshll.u32 %v1679, 16
        %v1714 = vrot.slane %v1712, 5
        %v1715 = vsel %vm216, %v1710, %v1714
        %v1716 = vshrl.u32 %v1679, 16
        %v1718 = vrot.slane %v1716, 4
        %v1719 = vor.u32 %v1718, %v1714
        %v1720 = vrot.slane %v1719, 4
        %v1722 = vshll.u32 %v1680, 16
        %v1724 = vrot.slane %v1722, 5
        %v1725 = vsel %vm216, %v1720, %v1724
        %v1727 = vshrl.u32 %v1681, 16
        %v1729 = vrot.slane %v1727, 4
        %v1730 = vshll.u32 %v1681, 16
        %v1732 = vrot.slane %v1730, 5
        %v1733 = vor.u32 %v1729, %v1732
        %v1734 = vrot.slane %v1733, 4
        %v1736 = vshll.u32 %v1682, 16
        %v1738 = vrot.slane %v1736, 5
        %v1739 = vsel %vm216, %v1734, %v1738
        %v1740 = vshrl.u32 %v1682, 16
        %v1742 = vrot.slane %v1740, 4
        %v1743 = vor.u32 %v1742, %v1738
        %v1744 = vrot.slane %v1743, 4
        %v1746 = vshll.u32 %v1683, 16
        %v1748 = vrot.slane %v1746, 5
        %v1749 = vsel %vm216, %v1744, %v1748
        %v1751 = vshrl.u32 %v1684, 16
        %v1753 = vrot.slane %v1751, 4
        %v1754 = vshll.u32 %v1684, 16
        %v1756 = vrot.slane %v1754, 5
        %v1757 = vor.u32 %v1753, %v1756
        %v1758 = vrot.slane %v1757, 4
        %v1760 = vshll.u32 %v1685, 16
        %v1762 = vrot.slane %v1760, 5
        %v1763 = vsel %vm216, %v1758, %v1762
        %v1764 = vshrl.u32 %v1685, 16
        %v1766 = vrot.slane %v1764, 4
        %v1767 = vor.u32 %v1766, %v1762
        %v1768 = vrot.slane %v1767, 4
        %v1770 = vshll.u32 %v1686, 16
        %v1772 = vrot.slane %v1770, 5
        %v1773 = vsel %vm216, %v1768, %v1772
        %v1775 = vshrl.u32 %v1687, 16
        %v1777 = vrot.slane %v1775, 4
        %v1778 = vshll.u32 %v1687, 16
        %v1780 = vrot.slane %v1778, 5
        %v1781 = vor.u32 %v1777, %v1780
        %v1782 = vrot.slane %v1781, 4
        %v1784 = vshll.u32 %v1688, 16
        %v1786 = vrot.slane %v1784, 5
        %v1787 = vsel %vm216, %v1782, %v1786
        %v1788 = vshrl.u32 %v1688, 16
        %v1790 = vrot.slane %v1788, 4
        %v1791 = vor.u32 %v1790, %v1786
        %v1792 = vrot.slane %v1791, 4
        %v1794 = vshll.u32 %v1689, 16
        %v1796 = vrot.slane %v1794, 5
        %v1797 = vsel %vm216, %v1792, %v1796
        %v1799 = vshrl.u32 %v1690, 16
        %v1801 = vrot.slane %v1799, 4
        %v1802 = vshll.u32 %v1690, 16
        %v1804 = vrot.slane %v1802, 5
        %v1805 = vor.u32 %v1801, %v1804
        %v1806 = vrot.slane %v1805, 4
        %v1808 = vshll.u32 %v1691, 16
        %v1810 = vrot.slane %v1808, 5
        %v1811 = vsel %vm216, %v1806, %v1810
        %v1812 = vshrl.u32 %v1691, 16
        %v1814 = vrot.slane %v1812, 4
        %v1815 = vor.u32 %v1814, %v1810
        %v1816 = vrot.slane %v1815, 4
        %v1818 = vshll.u32 %v1692, 16
        %v1820 = vrot.slane %v1818, 5
        %v1821 = vsel %vm216, %v1816, %v1820
        %v1823 = vshrl.u32 %v1693, 16
        %v1825 = vrot.slane %v1823, 4
        %v1826 = vshll.u32 %v1693, 16
        %v1828 = vrot.slane %v1826, 5
        %v1829 = vor.u32 %v1825, %v1828
        %v1830 = vrot.slane %v1829, 4
        %v1832 = vshll.u32 %v1694, 16
        %v1834 = vrot.slane %v1832, 5
        %v1835 = vsel %vm216, %v1830, %v1834
        %v1836 = vshrl.u32 %v1694, 16
        %v1838 = vrot.slane %v1836, 4
        %v1839 = vor.u32 %v1838, %v1834
        %v1840 = vrot.slane %v1839, 4
        %v1842 = vshll.u32 %v1695, 16
        %v1844 = vrot.slane %v1842, 5
        %v1845 = vsel %vm216, %v1840, %v1844
        %v1847 = vshrl.u32 %v1696, 16
        %v1849 = vrot.slane %v1847, 4
        %v1850 = vshll.u32 %v1696, 16
        %v1852 = vrot.slane %v1850, 5
        %v1853 = vor.u32 %v1849, %v1852
        %v1854 = vrot.slane %v1853, 4
        %v1856 = vshll.u32 %v1697, 16
        %v1858 = vrot.slane %v1856, 5
        %v1859 = vsel %vm216, %v1854, %v1858
        %v1860 = vshrl.u32 %v1697, 16
        %v1862 = vrot.slane %v1860, 4
        %v1863 = vor.u32 %v1862, %v1858
        %v1864 = vrot.slane %v1863, 4
        %v1866 = vshll.u32 %v1698, 16
        %v1868 = vrot.slane %v1866, 5
        %v1869 = vsel %vm216, %v1864, %v1868
        %v1871 = vshrl.u32 %v1699, 16
        %v1873 = vrot.slane %v1871, 4
        %v1874 = vshll.u32 %v1699, 16
        %v1876 = vrot.slane %v1874, 5
        %v1877 = vor.u32 %v1873, %v1876
        %v1878 = vrot.slane %v1877, 4
        %v1880 = vshll.u32 %v1700, 16
        %v1882 = vrot.slane %v1880, 5
        %v1883 = vsel %vm216, %v1878, %v1882
        %v1884 = vshrl.u32 %v1700, 16
        %v1886 = vrot.slane %v1884, 4
        %v1887 = vor.u32 %v1886, %v1882
        %v1888 = vrot.slane %v1887, 4
        %v1890 = vshll.u32 %v1701, 16
        %v1892 = vrot.slane %v1890, 5
        %v1893 = vsel %vm216, %v1888, %v1892
        %s1894 = scalar_lea.vmem %s1, 14
        %v1895 = vld [vmem:[%s1894] sm:$0x3]
        %v1896 = vunpack.c.l.b16 %v1715
        %v1897 = vunpack.c.l.b16 %v1725
        %v1898 = vunpack.c.l.b16 %v1739
        %v1899 = vunpack.c.l.b16 %v1749
        %v1900 = vunpack.c.l.b16 %v1763
        %v1901 = vunpack.c.l.b16 %v1773
        %v1902 = vunpack.c.l.b16 %v1787
        %v1903 = vunpack.c.l.b16 %v1797
        %v1904 = vunpack.c.l.b16 %v1811
        %v1905 = vunpack.c.l.b16 %v1821
        %v1906 = vunpack.c.l.b16 %v1835
        %v1907 = vunpack.c.l.b16 %v1845
        %v1908 = vunpack.c.l.b16 %v1859
        %v1909 = vunpack.c.l.b16 %v1869
        %v1910 = vunpack.c.l.b16 %v1883
        %v1911 = vunpack.c.l.b16 %v1893
        %v1912 = vpack.c.b16 %v1897, %v1896
        %v1913 = vpack.c.b16 %v1899, %v1898
        %v1914 = vpack.c.b16 %v1901, %v1900
        %v1915 = vpack.c.b16 %v1903, %v1902
        %v1916 = vpack.c.b16 %v1905, %v1904
        %v1917 = vpack.c.b16 %v1907, %v1906
        %v1918 = vpack.c.b16 %v1909, %v1908
        %v1919 = vpack.c.b16 %v1911, %v1910
        %v1921 = vsel %vm435, %v1912, 0
        %v1924 = vsel %vm435, %v1913, 0
        %v1927 = vsel %vm435, %v1914, 0
        %v1930 = vsel %vm435, %v1915, 0
        %v1933 = vsel %vm435, %v1916, 0
        %v1936 = vsel %vm435, %v1917, 0
        %v1939 = vsel %vm435, %v1918, 0
        %v1942 = vsel %vm435, %v1919, 0
        %v1945 = vsel %vm460, %v1895, 0
        %1947 = vmatpush.bf16.msra.mxu0 0
        %1948 = vmatpush.bf16.msra.mxu0 0
        %1949 = vmatpush.bf16.msra.mxu0 0
        %1950 = vmatpush.bf16.msra.mxu0 0
        %1951 = vmatpush.bf16.msra.mxu0 0
        %1952 = vmatpush.bf16.msra.mxu0 0
        %1953 = vmatpush.bf16.msra.mxu0 0
        %1954 = vmatpush.bf16.msra.mxu0 %v1945
        %1955 = vmatmul.bf16.gmra.mxu0 %v1921
        %v1956 = vpop.f32.mrf.mxu0
        %v1957 = vadd.f32 0.0, %v1956
        %v1958 = vpop.f32.mrf.mxu0
        %v1959 = vadd.f32 0.0, %v1958
        %1960 = vmatmul.bf16.gmra.mxu0 %v1924
        %v1961 = vpop.f32.mrf.mxu0
        %v1962 = vadd.f32 0.0, %v1961
        %v1963 = vpop.f32.mrf.mxu0
        %v1964 = vadd.f32 0.0, %v1963
        %1965 = vmatmul.bf16.gmra.mxu0 %v1927
        %v1966 = vpop.f32.mrf.mxu0
        %v1967 = vadd.f32 0.0, %v1966
        %v1968 = vpop.f32.mrf.mxu0
        %v1969 = vadd.f32 0.0, %v1968
        %1970 = vmatmul.bf16.gmra.mxu0 %v1930
        %v1971 = vpop.f32.mrf.mxu0
        %v1972 = vadd.f32 0.0, %v1971
        %v1973 = vpop.f32.mrf.mxu0
        %v1974 = vadd.f32 0.0, %v1973
        %1975 = vmatmul.bf16.gmra.mxu0 %v1933
        %v1976 = vpop.f32.mrf.mxu0
        %v1977 = vadd.f32 0.0, %v1976
        %v1978 = vpop.f32.mrf.mxu0
        %v1979 = vadd.f32 0.0, %v1978
        %1980 = vmatmul.bf16.gmra.mxu0 %v1936
        %v1981 = vpop.f32.mrf.mxu0
        %v1982 = vadd.f32 0.0, %v1981
        %v1983 = vpop.f32.mrf.mxu0
        %v1984 = vadd.f32 0.0, %v1983
        %1985 = vmatmul.bf16.gmra.mxu0 %v1939
        %v1986 = vpop.f32.mrf.mxu0
        %v1987 = vadd.f32 0.0, %v1986
        %v1988 = vpop.f32.mrf.mxu0
        %v1989 = vadd.f32 0.0, %v1988
        %1990 = vmatmul.bf16.gmra.mxu0 %v1942
        %v1991 = vpop.f32.mrf.mxu0
        %v1992 = vadd.f32 0.0, %v1991
        %v1993 = vpop.f32.mrf.mxu0
        %v1994 = vadd.f32 0.0, %v1993
        %1995 = vdwg.mxu0
        %v1996 = vadd.f32 %v1662, %v1957
        %v1997 = vadd.f32 %v1663, %v1959
        %v1998 = vadd.f32 %v1664, %v1962
        %v1999 = vadd.f32 %v1665, %v1964
        %v2000 = vadd.f32 %v1666, %v1967
        %v2001 = vadd.f32 %v1667, %v1969
        %v2002 = vadd.f32 %v1668, %v1972
        %v2003 = vadd.f32 %v1669, %v1974
        %v2004 = vadd.f32 %v1670, %v1977
        %v2005 = vadd.f32 %v1671, %v1979
        %v2006 = vadd.f32 %v1672, %v1982
        %v2007 = vadd.f32 %v1673, %v1984
        %v2008 = vadd.f32 %v1674, %v1987
        %v2009 = vadd.f32 %v1675, %v1989
        %v2010 = vadd.f32 %v1676, %v1992
        %v2011 = vadd.f32 %v1677, %v1994
        %v2012 = vld [vmem:[%s1527] sm:$0xe]
        %v2013 = vld [vmem:[%s1527 + $0xc] sm:$0xe]
        %v2014 = vld [vmem:[%s1527 + $0x18] sm:$0xe]
        %v2015 = vld [vmem:[%s1527 + $0x24] sm:$0xe]
        %v2016 = vld [vmem:[%s1527 + $0x30] sm:$0xe]
        %v2017 = vld [vmem:[%s1527 + $0x3c] sm:$0xe]
        %v2018 = vld [vmem:[%s1527 + $0x48] sm:$0xe]
        %v2019 = vld [vmem:[%s1527 + $0x54] sm:$0xe]
        %v2044 = vrot.slane %v2012, 5
        %v2045 = vrot.slane %v2044, 4
        %v2046 = vrot.slane %v1679, 5
        %v2047 = vsel %vm655, %v2045, %v2046
        %v2048 = vrot.slane %v2046, 4
        %v2049 = vrot.slane %v1680, 5
        %v2050 = vsel %vm655, %v2048, %v2049
        %v2051 = vrot.slane %v2013, 5
        %v2052 = vrot.slane %v2051, 4
        %v2053 = vrot.slane %v1682, 5
        %v2054 = vsel %vm655, %v2052, %v2053
        %v2055 = vrot.slane %v2053, 4
        %v2056 = vrot.slane %v1683, 5
        %v2057 = vsel %vm655, %v2055, %v2056
        %v2058 = vrot.slane %v2014, 5
        %v2059 = vrot.slane %v2058, 4
        %v2060 = vrot.slane %v1685, 5
        %v2061 = vsel %vm655, %v2059, %v2060
        %v2062 = vrot.slane %v2060, 4
        %v2063 = vrot.slane %v1686, 5
        %v2064 = vsel %vm655, %v2062, %v2063
        %v2065 = vrot.slane %v2015, 5
        %v2066 = vrot.slane %v2065, 4
        %v2067 = vrot.slane %v1688, 5
        %v2068 = vsel %vm655, %v2066, %v2067
        %v2069 = vrot.slane %v2067, 4
        %v2070 = vrot.slane %v1689, 5
        %v2071 = vsel %vm655, %v2069, %v2070
        %v2072 = vrot.slane %v2016, 5
        %v2073 = vrot.slane %v2072, 4
        %v2074 = vrot.slane %v1691, 5
        %v2075 = vsel %vm655, %v2073, %v2074
        %v2076 = vrot.slane %v2074, 4
        %v2077 = vrot.slane %v1692, 5
        %v2078 = vsel %vm655, %v2076, %v2077
        %v2079 = vrot.slane %v2017, 5
        %v2080 = vrot.slane %v2079, 4
        %v2081 = vrot.slane %v1694, 5
        %v2082 = vsel %vm655, %v2080, %v2081
        %v2083 = vrot.slane %v2081, 4
        %v2084 = vrot.slane %v1695, 5
        %v2085 = vsel %vm655, %v2083, %v2084
        %v2086 = vrot.slane %v2018, 5
        %v2087 = vrot.slane %v2086, 4
        %v2088 = vrot.slane %v1697, 5
        %v2089 = vsel %vm655, %v2087, %v2088
        %v2090 = vrot.slane %v2088, 4
        %v2091 = vrot.slane %v1698, 5
        %v2092 = vsel %vm655, %v2090, %v2091
        %v2093 = vrot.slane %v2019, 5
        %v2094 = vrot.slane %v2093, 4
        %v2095 = vrot.slane %v1700, 5
        %v2096 = vsel %vm655, %v2094, %v2095
        %v2097 = vrot.slane %v2095, 4
        %v2098 = vrot.slane %v1701, 5
        %v2099 = vsel %vm655, %v2097, %v2098
        %s2100 = scalar_lea.vmem %s1, 16
        %v2101 = vld [vmem:[%s2100] sm:$0x3]
        %v2102 = vunpack.c.l.b16 %v2047
        %v2103 = vunpack.c.l.b16 %v2050
        %v2104 = vunpack.c.l.b16 %v2054
        %v2105 = vunpack.c.l.b16 %v2057
        %v2106 = vunpack.c.l.b16 %v2061
        %v2107 = vunpack.c.l.b16 %v2064
        %v2108 = vunpack.c.l.b16 %v2068
        %v2109 = vunpack.c.l.b16 %v2071
        %v2110 = vunpack.c.l.b16 %v2075
        %v2111 = vunpack.c.l.b16 %v2078
        %v2112 = vunpack.c.l.b16 %v2082
        %v2113 = vunpack.c.l.b16 %v2085
        %v2114 = vunpack.c.l.b16 %v2089
        %v2115 = vunpack.c.l.b16 %v2092
        %v2116 = vunpack.c.l.b16 %v2096
        %v2117 = vunpack.c.l.b16 %v2099
        %v2118 = vpack.c.b16 %v2103, %v2102
        %v2119 = vpack.c.b16 %v2105, %v2104
        %v2120 = vpack.c.b16 %v2107, %v2106
        %v2121 = vpack.c.b16 %v2109, %v2108
        %v2122 = vpack.c.b16 %v2111, %v2110
        %v2123 = vpack.c.b16 %v2113, %v2112
        %v2124 = vpack.c.b16 %v2115, %v2114
        %v2125 = vpack.c.b16 %v2117, %v2116
        %v2127 = vsel %vm435, %v2118, 0
        %v2130 = vsel %vm435, %v2119, 0
        %v2133 = vsel %vm435, %v2120, 0
        %v2136 = vsel %vm435, %v2121, 0
        %v2139 = vsel %vm435, %v2122, 0
        %v2142 = vsel %vm435, %v2123, 0
        %v2145 = vsel %vm435, %v2124, 0
        %v2148 = vsel %vm435, %v2125, 0
        %v2151 = vsel %vm460, %v2101, 0
        %2153 = vmatpush.bf16.msra.mxu0 0
        %2154 = vmatpush.bf16.msra.mxu0 0
        %2155 = vmatpush.bf16.msra.mxu0 0
        %2156 = vmatpush.bf16.msra.mxu0 0
        %2157 = vmatpush.bf16.msra.mxu0 0
        %2158 = vmatpush.bf16.msra.mxu0 0
        %2159 = vmatpush.bf16.msra.mxu0 0
        %2160 = vmatpush.bf16.msra.mxu0 %v2151
        %2161 = vmatmul.bf16.gmra.mxu0 %v2127
        %v2162 = vpop.f32.mrf.mxu0
        %v2163 = vadd.f32 0.0, %v2162
        %v2164 = vpop.f32.mrf.mxu0
        %v2165 = vadd.f32 0.0, %v2164
        %2166 = vmatmul.bf16.gmra.mxu0 %v2130
        %v2167 = vpop.f32.mrf.mxu0
        %v2168 = vadd.f32 0.0, %v2167
        %v2169 = vpop.f32.mrf.mxu0
        %v2170 = vadd.f32 0.0, %v2169
        %2171 = vmatmul.bf16.gmra.mxu0 %v2133
        %v2172 = vpop.f32.mrf.mxu0
        %v2173 = vadd.f32 0.0, %v2172
        %v2174 = vpop.f32.mrf.mxu0
        %v2175 = vadd.f32 0.0, %v2174
        %2176 = vmatmul.bf16.gmra.mxu0 %v2136
        %v2177 = vpop.f32.mrf.mxu0
        %v2178 = vadd.f32 0.0, %v2177
        %v2179 = vpop.f32.mrf.mxu0
        %v2180 = vadd.f32 0.0, %v2179
        %2181 = vmatmul.bf16.gmra.mxu0 %v2139
        %v2182 = vpop.f32.mrf.mxu0
        %v2183 = vadd.f32 0.0, %v2182
        %v2184 = vpop.f32.mrf.mxu0
        %v2185 = vadd.f32 0.0, %v2184
        %2186 = vmatmul.bf16.gmra.mxu0 %v2142
        %v2187 = vpop.f32.mrf.mxu0
        %v2188 = vadd.f32 0.0, %v2187
        %v2189 = vpop.f32.mrf.mxu0
        %v2190 = vadd.f32 0.0, %v2189
        %2191 = vmatmul.bf16.gmra.mxu0 %v2145
        %v2192 = vpop.f32.mrf.mxu0
        %v2193 = vadd.f32 0.0, %v2192
        %v2194 = vpop.f32.mrf.mxu0
        %v2195 = vadd.f32 0.0, %v2194
        %2196 = vmatmul.bf16.gmra.mxu0 %v2148
        %v2197 = vpop.f32.mrf.mxu0
        %v2198 = vadd.f32 0.0, %v2197
        %v2199 = vpop.f32.mrf.mxu0
        %v2200 = vadd.f32 0.0, %v2199
        %2201 = vdwg.mxu0
        %v2202 = vadd.f32 %v1996, %v2163
        %v2203 = vadd.f32 %v1997, %v2165
        %v2204 = vadd.f32 %v1998, %v2168
        %v2205 = vadd.f32 %v1999, %v2170
        %v2206 = vadd.f32 %v2000, %v2173
        %v2207 = vadd.f32 %v2001, %v2175
        %v2208 = vadd.f32 %v2002, %v2178
        %v2209 = vadd.f32 %v2003, %v2180
        %v2210 = vadd.f32 %v2004, %v2183
        %v2211 = vadd.f32 %v2005, %v2185
        %v2212 = vadd.f32 %v2006, %v2188
        %v2213 = vadd.f32 %v2007, %v2190
        %v2214 = vadd.f32 %v2008, %v2193
        %v2215 = vadd.f32 %v2009, %v2195
        %v2216 = vadd.f32 %v2010, %v2198
        %v2217 = vadd.f32 %v2011, %v2200
        %v2218 = vld [vmem:[%s2] sm:$0x1]
        %v2220 = vperm.slane %v2218, 0
        %v2222 = vadd.f32 %v2202, %v2220
        %v2223 = vadd.f32 %v2203, %v2220
        %v2224 = vadd.f32 %v2204, %v2220
        %v2225 = vadd.f32 %v2205, %v2220
        %v2226 = vadd.f32 %v2206, %v2220
        %v2227 = vadd.f32 %v2207, %v2220
        %v2228 = vadd.f32 %v2208, %v2220
        %v2229 = vadd.f32 %v2209, %v2220
        %v2230 = vadd.f32 %v2210, %v2220
        %v2231 = vadd.f32 %v2211, %v2220
        %v2232 = vadd.f32 %v2212, %v2220
        %v2233 = vadd.f32 %v2213, %v2220
        %v2234 = vadd.f32 %v2214, %v2220
        %v2235 = vadd.f32 %v2215, %v2220
        %v2236 = vadd.f32 %v2216, %v2220
        %v2237 = vadd.f32 %v2217, %v2220
        %v2238 = vpack.c.bf16 %v2222, %v2222
        %v2239 = vpack.c.bf16 %v2223, %v2223
        %v2240 = vpack.c.bf16 %v2224, %v2224
        %v2241 = vpack.c.bf16 %v2225, %v2225
        %v2242 = vpack.c.bf16 %v2226, %v2226
        %v2243 = vpack.c.bf16 %v2227, %v2227
        %v2244 = vpack.c.bf16 %v2228, %v2228
        %v2245 = vpack.c.bf16 %v2229, %v2229
        %v2246 = vpack.c.bf16 %v2230, %v2230
        %v2247 = vpack.c.bf16 %v2231, %v2231
        %v2248 = vpack.c.bf16 %v2232, %v2232
        %v2249 = vpack.c.bf16 %v2233, %v2233
        %v2250 = vpack.c.bf16 %v2234, %v2234
        %v2251 = vpack.c.bf16 %v2235, %v2235
        %v2252 = vpack.c.bf16 %v2236, %v2236
        %v2253 = vpack.c.bf16 %v2237, %v2237
        %2254 = vst [vmem:[%s177] sm:$0xf] %v2238
        %2255 = vst [vmem:[%s177 + $0x4] sm:$0xf] %v2239
        %2256 = vst [vmem:[%s177 + $0x8] sm:$0xf] %v2240
        %2257 = vst [vmem:[%s177 + $0xc] sm:$0xf] %v2241
        %2258 = vst [vmem:[%s177 + $0x10] sm:$0xf] %v2242
        %2259 = vst [vmem:[%s177 + $0x14] sm:$0xf] %v2243
        %2260 = vst [vmem:[%s177 + $0x18] sm:$0xf] %v2244
        %2261 = vst [vmem:[%s177 + $0x1c] sm:$0xf] %v2245
        %2262 = vst [vmem:[%s177 + $0x20] sm:$0xf] %v2246
        %2263 = vst [vmem:[%s177 + $0x24] sm:$0xf] %v2247
        %2264 = vst [vmem:[%s177 + $0x28] sm:$0xf] %v2248
        %2265 = vst [vmem:[%s177 + $0x2c] sm:$0xf] %v2249
        %2266 = vst [vmem:[%s177 + $0x30] sm:$0xf] %v2250
        %2267 = vst [vmem:[%s177 + $0x34] sm:$0xf] %v2251
        %2268 = vst [vmem:[%s177 + $0x38] sm:$0xf] %v2252
        %2269 = vst [vmem:[%s177 + $0x3c] sm:$0xf] %v2253
        %s2270 = sand.u32 %s107, 1
        %s2271 = scalar_lea.sflag [#allocation3], %s2270
        %s2272 = sand.u32 %s107, 1
        %s2273 = smul.addr %s2272, 64
        %s2274 = scalar_lea.vmem [#allocation2], %s2273
        // Predicated region
        $region33: #{tpu_custom_call.1} parent=31 // pred_check
          %p2275 = pneg %p117
        $region34: #{tpu_custom_call.1} parent=31 // pred_check_branch
          %2277 = sbr.rel (%p2275) target = $region36
        $region35: #{tpu_custom_call.1} parent=31 // pred_region
          %s2278 = smul.u32 16, %s22
          %2280 = vsyncadd %s2271, 0
          %s2281 = smul.addr %s21, 32
          %s2282 = sadd.s32 %s2278, %s2281
          %s2283 = smul.addr %s2282, 4
          %s2284 = scalar_lea.hbm %s3, %s2283
          %s2285 = sshll.u32 %s2274, 4
          %s2286 = int_to_ptr.vmem [resolvable:$true] %s2285
          %s2287 = sshll.u32 %s2284, 4
          %s2288 = int_to_ptr.hbm [resolvable:$true] %s2287
          %2293 = dma.vmem_to_hbm [thread:$0]  %s2286, 1024, %s2288, %s2271, 64, 64, 4
        $region36: #{tpu_custom_call.1} parent=31 // pred_fallthru
          _
      $region32: #{tpu_custom_call.1} parent=5 // pred_fallthru
        _
      %p2294 = scmp.le.s32.totalorder 2, %s12
      // Predicated region
      $region37: #{tpu_custom_call.1} parent=5 // pred_check
        %p2295 = pneg %p2294
      $region38: #{tpu_custom_call.1} parent=5 // pred_check_branch
        %2297 = sbr.rel (%p2295) target = $region40
      $region39: #{tpu_custom_call.1} parent=5 // pred_region
        %s2298 = ssub.s32 %s12, 2
        // Predicated region
        $region41: #{tpu_custom_call.1} parent=39 // pred_check
          %p2299 = pneg %p123
        $region42: #{tpu_custom_call.1} parent=39 // pred_check_branch
          %2301 = sbr.rel (%p2299) target = $region44
        $region43: #{tpu_custom_call.1} parent=39 // pred_region
          %s2302 = sand.u32 %s108, 1
          %s2303 = scalar_lea.sflag [#allocation3], %s2302
          %s2304 = sand.u32 %s108, 1
          %s2305 = smul.addr %s2304, 64
          %s2306 = scalar_lea.vmem [#allocation2], %s2305
          %2308 = dma.done %s2303, 1024
        $region44: #{tpu_custom_call.1} parent=39 // pred_fallthru
          _
      $region40: #{tpu_custom_call.1} parent=5 // pred_fallthru
        _
    $region6: #{tpu_custom_call.1} parent=1 // loop_footer
      %s16 = sadd.s32 1, %s12
    $region7: #{tpu_custom_call.1} parent=1 // loop_footer_branch
      %11 = sbr.rel target = $region3
    $region8: #{tpu_custom_call.1} parent=1 // loop_exit
      _
    %2309 = vsyncpa [#allocation3], 1
    %s2310 = scalar_lea.sflag [#allocation3], 1
    %2311 = vsyncpa %s2310, 1

</llo_original>
